<compile_context>
chip_gen: v5e
topology: v5e:2x2
jax: 0.10.0
libtpu: 0.0.40
codegen_flags: <defaults>
</compile_context>

<pallas_src>
import numpy as np
import jax
import jax.numpy as jnp
from jax import lax
from jax.experimental import pallas as pl
from jax.experimental.pallas import tpu as pltpu

EPS = 1e-5
COMPUTE_DTYPE = jnp.bfloat16   # MXU operand dtype; accumulation stays f32


# ----------------------------------------------------------------------------
# Fused Pallas kernel: one (Bt*H, W*C) activation slab per grid step
# ----------------------------------------------------------------------------
def _conv_up_block_kernel(xv_ref, skip_ref, edge_ref, mc1_ref, ba1_ref,
                          m0_ref, ba0_ref, m1_ref, bar1_ref, m2_ref, bar2_ref,
                          w11_ref, b11_ref, o_ref):
    """Whole ConvUpBlock_alt_upsample for Bt images, all resident in VMEM.

    xv_ref   : (M, Win*Chalf)  vertically-upsampled low-res input (bf16)
    skip_ref : (M, W*Chalf)    skip connection (bf16)
    edge_ref : (M, 2)          f32 {0,1} masks: col0 keeps non-first rows,
                               col1 keeps non-last rows of each sub-image
    mc1/m0/m1/m2 : (K, 3*N)    packed band matrices (dy=-1,0,+1 along columns),
                               BN scale folded in, bf16
    ba*/bar* : (2, N)          rows = [folded bias, PReLU slope], f32
    w11      : (N, N)          block-diagonal 1x1 conv, bf16
    b11      : (1, N)          tiled 1x1 bias, f32
    o_ref    : (M, N)          lane-dense output slab (N multiple of 128)
    """
    f32 = jnp.float32
    cd = m1_ref.dtype                      # bf16 compute dtype for the MXU path
    M = o_ref.shape[0]

    keep_top = edge_ref[:, 0:1]            # (M, 1) zero on first row per image
    keep_bot = edge_ref[:, 1:2]            # (M, 1) zero on last row per image

    def conv3(a, mp_ref):
        # One wide matmul for all three dy taps, then XLU rolls + VPU masks.
        p = jnp.dot(a, mp_ref[...], preferred_element_type=f32)   # (M, 3N)
        n = p.shape[1] // 3
        from_above = pltpu.roll(p[:, :n], 1, 0) * keep_top        # x[h-1] taps
        from_below = pltpu.roll(p[:, 2 * n:], M - 1, 0) * keep_bot  # x[h+1]
        return p[:, n:2 * n] + from_above + from_below

    def bias_prelu(acc, ba_ref):
        y = acc + ba_ref[0:1, :]                                  # folded bias
        return jnp.where(y > 0, y, ba_ref[1:2, :] * y)            # PReLU

    # conv_1 + BN + PReLU on the nearest-upsampled input (horizontal upsample
    # is folded into mc1, vertical handled by the wrapper's row gather).
    up = bias_prelu(conv3(xv_ref[...], mc1_ref), ba1_ref).astype(cd)

    # layers[0]: conv3x3 over concat([skip, up]) -- channel concat realised as
    # a lane concat against a band matrix laid out for that order (K = 256).
    cat = jnp.concatenate([skip_ref[...], up], axis=-1)
    t = bias_prelu(conv3(cat, m0_ref), ba0_ref)
    tb = t.astype(cd)

    # ResidualBlock: two conv-BN-PReLU stages plus the 1x1-conv residual.
    y1 = bias_prelu(conv3(tb, m1_ref), bar1_ref).astype(cd)
    y2 = bias_prelu(conv3(y1, m2_ref), bar2_ref)
    res = jnp.dot(tb, w11_ref[...], preferred_element_type=f32) + b11_ref[...]

    o_ref[...] = (res + y2).astype(o_ref.dtype)


# ----------------------------------------------------------------------------
# Wrapper: one pallas_call over batch tiles
# ----------------------------------------------------------------------------
def _pick_batch_tile(B, max_bt=8):
    """Largest divisor of B <= max_bt, preferring >= 2 grid steps (v7x: 2 TCs)."""
    divs = [d for d in range(1, min(B, max_bt) + 1) if B % d == 0]
    two_step = [d for d in divs if B // d >= 2]
    return max(two_step) if two_step else max(divs)


def conv_up_block_forward(prep, input_nchw, skip_nchw):
    x = jnp.transpose(input_nchw, (0, 2, 3, 1))        # NHWC, low-res
    skip = jnp.transpose(skip_nchw, (0, 2, 3, 1))      # NHWC
    B, Hin, Win, Ch = x.shape
    _, H, W, _ = skip.shape
    ncol_out = prep['b11'].shape[1]                     # W * out_chans
    bt = _pick_batch_tile(B)
    assert B % bt == 0

    # Vertical nearest upsample = constant row gather (trace-time indices);
    # horizontal upsample / kx taps / SAME padding live in the mc1 band matrix.
    src_h = np.floor(np.arange(H) * (Hin / H)).astype(np.int32)
    xv = x[:, src_h, :, :]                              # (B, H, Win, Ch)

    xv2d = xv.reshape(B * H, Win * Ch).astype(COMPUTE_DTYPE)
    skip2d = skip.reshape(B * H, W * Ch).astype(COMPUTE_DTYPE)

    # Per-sub-image edge masks for the roll-based dy taps.
    rows = np.arange(bt * H)
    edge = jnp.asarray(
        np.stack([(rows % H != 0), (rows % H != H - 1)], axis=1)
        .astype(np.float32))                            # (bt*H, 2)

    def full(a):
        return pl.BlockSpec(a.shape, lambda b, n=a.ndim: (0,) * n)

    out2d = pl.pallas_call(
        _conv_up_block_kernel,
        out_shape=jax.ShapeDtypeStruct((B * H, ncol_out), jnp.float32),
        grid_spec=pltpu.PrefetchScalarGridSpec(
            num_scalar_prefetch=0,
            grid=(B // bt,),
            in_specs=[
                pl.BlockSpec((bt * H, Win * Ch), lambda b: (b, 0)),
                pl.BlockSpec((bt * H, W * Ch), lambda b: (b, 0)),
                full(edge), full(prep['mc1']), full(prep['ba1']),
                full(prep['m0']), full(prep['ba0']),
                full(prep['m1']), full(prep['bar1']),
                full(prep['m2']), full(prep['bar2']),
                full(prep['w11']), full(prep['b11']),
            ],
            out_specs=pl.BlockSpec((bt * H, ncol_out), lambda b: (b, 0)),
        ),
        compiler_params=pltpu.CompilerParams(
            dimension_semantics=("parallel",)),
    )(xv2d, skip2d, edge, prep['mc1'], prep['ba1'], prep['m0'], prep['ba0'],
      prep['m1'], prep['bar1'], prep['m2'], prep['bar2'],
      prep['w11'], prep['b11'])

    out = out2d.reshape(B, H, W, ncol_out // W)
    return jnp.transpose(out, (0, 3, 1, 2))             # NCHW


# ----------------------------------------------------------------------------
# One-time operand preparation (all weight folding hoisted out of the forward)
# ----------------------------------------------------------------------------
def _band_matrix(w, W):
    """HWIO (3,3,cin,cout) -> (3, W*cin, W*cout); kx taps + horizontal SAME
    zero padding folded into the band.  Index [d] is dy = d-1."""
    _, _, cin, cout = w.shape
    m = np.zeros((3, W * cin, W * cout), np.float32)
    for d in range(3):
        for wo in range(W):
            for dx in (-1, 0, 1):
                wi = wo + dx
                if 0 <= wi < W:
                    m[d, wi * cin:(wi + 1) * cin,
                      wo * cout:(wo + 1) * cout] = w[d, dx + 1]
    return m


def _upsample_band_matrix(w, W, W_in):
    """conv_1 band matrix with the horizontal nearest upsample folded in."""
    _, _, cin, cout = w.shape
    src_w = np.floor(np.arange(W) * (W_in / W)).astype(np.int64)
    m = np.zeros((3, W_in * cin, W * cout), np.float32)
    for d in range(3):
        for wo in range(W):
            for dx in (-1, 0, 1):
                wp = wo + dx
                if 0 <= wp < W:
                    wi = int(src_w[wp])
                    m[d, wi * cin:(wi + 1) * cin,
                      wo * cout:(wo + 1) * cout] += w[d, dx + 1]
    return m


def _blockdiag_1x1(w11, W):
    cin, cout = w11.shape
    m = np.zeros((W * cin, W * cout), np.float32)
    for wo in range(W):
        m[wo * cin:(wo + 1) * cin, wo * cout:(wo + 1) * cout] = w11
    return m


def _fold_and_pack(m3, p, W):
    """Fold eval-mode BN scale into the band columns, pack the 3 dy taps along
    columns -> (K, 3*W*cout); build the (2, W*cout) [bias, alpha] table."""
    scale = np.asarray(p['gamma'], np.float32) / np.sqrt(
        np.asarray(p['var'], np.float32) + EPS)
    bias = (np.asarray(p['b'], np.float32)
            - np.asarray(p['mean'], np.float32)) * scale \
        + np.asarray(p['beta'], np.float32)
    alpha = np.full_like(scale, float(p['alpha']))
    m3 = m3 * np.tile(scale, W)[None, None, :]
    packed = np.concatenate([m3[0], m3[1], m3[2]], axis=-1)
    ba = np.stack([np.tile(bias, W), np.tile(alpha, W)], axis=0)
    return packed.astype(np.float32), ba.astype(np.float32)


def prepare_operands(params, W, W_in, compute_dtype=COMPUTE_DTYPE):
    """Precompute every kernel operand once (banded weights, folded BN, ...)."""
    w1 = np.asarray(params['conv_1']['w'], np.float32)
    w0 = np.asarray(params['layers0']['w'], np.float32)
    wr1 = np.asarray(params['rb1']['w'], np.float32)
    wr2 = np.asarray(params['rb2']['w'], np.float32)
    w11 = np.asarray(params['rb_1x1']['w'], np.float32)[0, 0]
    b11 = np.asarray(params['rb_1x1']['b'], np.float32)
    chalf = w1.shape[2]
    cout = w0.shape[3]

    mc1, ba1 = _fold_and_pack(_upsample_band_matrix(w1, W, W_in),
                              params['conv_1'], W)
    # layers[0] acts on the lane concat [skip | up]: skip band rows first.
    m0_3 = np.concatenate([_band_matrix(w0[:, :, :chalf, :], W),
                           _band_matrix(w0[:, :, chalf:, :], W)], axis=1)
    m0, ba0 = _fold_and_pack(m0_3, params['layers0'], W)
    m1, bar1 = _fold_and_pack(_band_matrix(wr1, W), params['rb1'], W)
    m2, bar2 = _fold_and_pack(_band_matrix(wr2, W), params['rb2'], W)

    return {
        'mc1': jnp.asarray(mc1, compute_dtype), 'ba1': jnp.asarray(ba1),
        'm0': jnp.asarray(m0, compute_dtype), 'ba0': jnp.asarray(ba0),
        'm1': jnp.asarray(m1, compute_dtype), 'bar1': jnp.asarray(bar1),
        'm2': jnp.asarray(m2, compute_dtype), 'bar2': jnp.asarray(bar2),
        'w11': jnp.asarray(_blockdiag_1x1(w11, W), compute_dtype),
        'b11': jnp.asarray(np.tile(b11, W).reshape(1, W * cout), jnp.float32),
    }


# ----------------------------------------------------------------------------
# Deterministic synthetic parameters (no checkpoint loading)
# ----------------------------------------------------------------------------
def _init_conv(key, cin, cout, k):
    wkey, bkey = jax.random.split(key)
    fan_in = cin * k * k
    w = jax.random.normal(wkey, (k, k, cin, cout), jnp.float32) / jnp.sqrt(fan_in)
    b = 0.05 * jax.random.normal(bkey, (cout,), jnp.float32)
    return w, b


def _init_bn(key, c):
    k1, k2, k3, k4 = jax.random.split(key, 4)
    gamma = 1.0 + 0.1 * jax.random.normal(k1, (c,), jnp.float32)
    beta = 0.1 * jax.random.normal(k2, (c,), jnp.float32)
    mean = 0.1 * jax.random.normal(k3, (c,), jnp.float32)
    var = 1.0 + 0.1 * jax.random.uniform(k4, (c,), jnp.float32)
    return gamma, beta, mean, var


def _make_cbp(key, cin, cout):
    k1, k2 = jax.random.split(key)
    w, b = _init_conv(k1, cin, cout, 3)
    gamma, beta, mean, var = _init_bn(k2, cout)
    return dict(w=w, b=b, gamma=gamma, beta=beta, mean=mean, var=var,
                alpha=jnp.float32(0.25))


def make_params(key, in_chans, out_chans):
    half = in_chans // 2
    keys = jax.random.split(key, 6)
    params = {
        'conv_1': _make_cbp(keys[0], half, half),
        'layers0': _make_cbp(keys[1], in_chans, out_chans),
        'rb1': _make_cbp(keys[2], out_chans, out_chans),
        'rb2': _make_cbp(keys[3], out_chans, out_chans),
    }
    w11, b11 = _init_conv(keys[4], out_chans, out_chans, 1)
    params['rb_1x1'] = dict(w=w11, b=b11)
    return params


# ----------------------------------------------------------------------------
# Pure-JAX f32 reference (for correctness checking)
# ----------------------------------------------------------------------------
def nearest_resize(x, out_h, out_w):
    _, h, w, _ = x.shape
    idx_h = jnp.floor(jnp.arange(out_h) * (h / out_h)).astype(jnp.int32)
    idx_w = jnp.floor(jnp.arange(out_w) * (w / out_w)).astype(jnp.int32)
    return x[:, idx_h][:, :, idx_w]


def _ref_cbp(p, z):
    y = lax.conv_general_dilated(z, p['w'], (1, 1), 'SAME',
                                 dimension_numbers=('NHWC', 'HWIO', 'NHWC'))
    y = y + p['b']
    y = (y - p['mean']) / jnp.sqrt(p['var'] + EPS) * p['gamma'] + p['beta']
    return jnp.where(y > 0, y, p['alpha'] * y)


def conv_up_block_reference(params, input_nchw, skip_nchw):
    x = jnp.transpose(input_nchw, (0, 2, 3, 1)).astype(jnp.float32)
    skip = jnp.transpose(skip_nchw, (0, 2, 3, 1)).astype(jnp.float32)
    H, W = skip.shape[1], skip.shape[2]

    resized = nearest_resize(x, H, W)
    up = _ref_cbp(params['conv_1'], resized)
    cat = jnp.concatenate([skip, up], axis=-1)

    t = _ref_cbp(params['layers0'], cat)
    y1 = _ref_cbp(params['rb1'], t)
    y2 = _ref_cbp(params['rb2'], y1)
    res = lax.conv_general_dilated(t, params['rb_1x1']['w'], (1, 1), 'SAME',
                                   dimension_numbers=('NHWC', 'HWIO', 'NHWC'))
    out = res + params['rb_1x1']['b'] + y2
    return jnp.transpose(out, (0, 3, 1, 2))


# ----------------------------------------------------------------------------
if __name__ == "__main__":
    B = 16                      # tiles into grid=(2,) with Bt=8 -> M=128 rows
    in_chans, out_chans = 8, 8
    H_in, W_in = 8, 8           # low-res `input`
    H, W = 16, 16               # `skip_input` spatial size (W*out_chans = 128)

    key = jax.random.PRNGKey(0)
    k_in, k_skip, k_par = jax.random.split(key, 3)

    # PyTorch convention: NCHW inputs
    input_nchw = jax.random.normal(k_in, (B, in_chans // 2, H_in, W_in),
                                   jnp.float32)
    skip_nchw = jax.random.normal(k_skip, (B, in_chans // 2, H, W),
                                  jnp.float32)

    params = make_params(k_par, in_chans, out_chans)
    prep = prepare_operands(params, W, W_in)        # folded once, up front

    fwd = jax.jit(conv_up_block_forward)
    out = jax.block_until_ready(fwd(prep, input_nchw, skip_nchw))

    ref = jax.block_until_ready(
        conv_up_block_reference(params, input_nchw, skip_nchw))

    assert out.shape == (B, out_chans, H, W), out.shape
    diff = jnp.abs(out - ref)
    max_err = float(jnp.max(diff))
    mean_err = float(jnp.mean(diff))
    # bf16 MXU operands with f32 accumulation: loosened tolerance vs f32 ref.
    assert max_err < 2e-1, f"max abs err {max_err}"
    assert mean_err < 3e-2, f"mean abs err {mean_err}"

    print("KERNEL_OK")
</pallas_src>

<mosaic_0001>
module attributes {stable_mosaic.version = 11 : i64} {
  func.func @_conv_up_block_kernel(%arg0: i32, %arg1: memref<128x32xbf16, #tpu.memory_space<vmem>>, %arg2: memref<128x64xbf16, #tpu.memory_space<vmem>>, %arg3: memref<128x2xf32, #tpu.memory_space<vmem>>, %arg4: memref<32x192xbf16, #tpu.memory_space<vmem>>, %arg5: memref<2x64xf32, #tpu.memory_space<vmem>>, %arg6: memref<128x384xbf16, #tpu.memory_space<vmem>>, %arg7: memref<2x128xf32, #tpu.memory_space<vmem>>, %arg8: memref<128x384xbf16, #tpu.memory_space<vmem>>, %arg9: memref<2x128xf32, #tpu.memory_space<vmem>>, %arg10: memref<128x384xbf16, #tpu.memory_space<vmem>>, %arg11: memref<2x128xf32, #tpu.memory_space<vmem>>, %arg12: memref<128x128xbf16, #tpu.memory_space<vmem>>, %arg13: memref<1x128xf32, #tpu.memory_space<vmem>>, %arg14: memref<128x128xf32, #tpu.memory_space<vmem>>) attributes {dimension_semantics = [#tpu.dimension_semantics<parallel>], iteration_bounds = array<i64: 2>, scalar_prefetch = 0 : i64, scratch_operands = 0 : i64, tpu.core_type = #tpu.core_type<tc>, window_params = [{transform_indices = @transform_0, window_bounds = array<i64: 128, 32>}, {transform_indices = @transform_1, window_bounds = array<i64: 128, 64>}, {pipeline_mode = #tpu.pipeline_mode<synchronous>, transform_indices = @transform_2, window_bounds = array<i64: 128, 2>}, {pipeline_mode = #tpu.pipeline_mode<synchronous>, transform_indices = @transform_3, window_bounds = array<i64: 32, 192>}, {pipeline_mode = #tpu.pipeline_mode<synchronous>, transform_indices = @transform_4, window_bounds = array<i64: 2, 64>}, {pipeline_mode = #tpu.pipeline_mode<synchronous>, transform_indices = @transform_5, window_bounds = array<i64: 128, 384>}, {pipeline_mode = #tpu.pipeline_mode<synchronous>, transform_indices = @transform_6, window_bounds = array<i64: 2, 128>}, {pipeline_mode = #tpu.pipeline_mode<synchronous>, transform_indices = @transform_7, window_bounds = array<i64: 128, 384>}, {pipeline_mode = #tpu.pipeline_mode<synchronous>, transform_indices = @transform_8, window_bounds = array<i64: 2, 128>}, {pipeline_mode = #tpu.pipeline_mode<synchronous>, transform_indices = @transform_9, window_bounds = array<i64: 128, 384>}, {pipeline_mode = #tpu.pipeline_mode<synchronous>, transform_indices = @transform_10, window_bounds = array<i64: 2, 128>}, {pipeline_mode = #tpu.pipeline_mode<synchronous>, transform_indices = @transform_11, window_bounds = array<i64: 128, 128>}, {pipeline_mode = #tpu.pipeline_mode<synchronous>, transform_indices = @transform_12, window_bounds = array<i64: 1, 128>}, {transform_indices = @transform_13, window_bounds = array<i64: 128, 128>}]} {
    %c0 = arith.constant 0 : index
    %c0_0 = arith.constant 0 : index
    %0 = vector.load %arg3[%c0, %c0_0] : memref<128x2xf32, #tpu.memory_space<vmem>>, vector<128x1xf32>
    %c0_1 = arith.constant 0 : index
    %c1 = arith.constant 1 : index
    %1 = vector.load %arg3[%c0_1, %c1] : memref<128x2xf32, #tpu.memory_space<vmem>>, vector<128x1xf32>
    %c0_2 = arith.constant 0 : index
    %c0_3 = arith.constant 0 : index
    %2 = vector.load %arg1[%c0_2, %c0_3] : memref<128x32xbf16, #tpu.memory_space<vmem>>, vector<128x32xbf16>
    %c0_4 = arith.constant 0 : index
    %c0_5 = arith.constant 0 : index
    %3 = vector.load %arg4[%c0_4, %c0_5] : memref<32x192xbf16, #tpu.memory_space<vmem>>, vector<32x192xbf16>
    %cst = arith.constant dense<0.000000e+00> : vector<128x192xf32>
    %4 = tpu.matmul %2, %3, %cst {dimension_numbers = #tpu.dot_dimension_numbers<[1], [0], [0], [1], [0, 0, 1, 1], [], []>} : vector<128x32xbf16>, vector<32x192xbf16>, vector<128x192xf32> -> vector<128x192xf32>
    %5 = vector.extract_strided_slice %4 {offsets = [0, 0], sizes = [128, 64], strides = [1, 1]} : vector<128x192xf32> to vector<128x64xf32>
    %c1_i32 = arith.constant 1 : i32
    %6 = tpu.dynamic_rotate %5 by %c1_i32 dim 0 : vector<128x64xf32>, i32 -> vector<128x64xf32>
    %7 = vector.broadcast %0 : vector<128x1xf32> to vector<128x64xf32>
    %8 = arith.mulf %6, %7 : vector<128x64xf32>
    %9 = vector.extract_strided_slice %4 {offsets = [0, 128], sizes = [128, 64], strides = [1, 1]} : vector<128x192xf32> to vector<128x64xf32>
    %c127_i32 = arith.constant 127 : i32
    %10 = tpu.dynamic_rotate %9 by %c127_i32 dim 0 : vector<128x64xf32>, i32 -> vector<128x64xf32>
    %11 = vector.broadcast %1 : vector<128x1xf32> to vector<128x64xf32>
    %12 = arith.mulf %10, %11 : vector<128x64xf32>
    %13 = vector.extract_strided_slice %4 {offsets = [0, 64], sizes = [128, 64], strides = [1, 1]} : vector<128x192xf32> to vector<128x64xf32>
    %14 = arith.addf %13, %8 : vector<128x64xf32>
    %15 = arith.addf %14, %12 : vector<128x64xf32>
    %c0_6 = arith.constant 0 : index
    %c0_7 = arith.constant 0 : index
    %16 = vector.load %arg5[%c0_6, %c0_7] : memref<2x64xf32, #tpu.memory_space<vmem>>, vector<1x64xf32>
    %17 = vector.broadcast %16 : vector<1x64xf32> to vector<128x64xf32>
    %18 = arith.addf %15, %17 : vector<128x64xf32>
    %cst_8 = arith.constant 0.000000e+00 : f32
    %19 = vector.broadcast %cst_8 : f32 to vector<128x64xf32>
    %20 = arith.cmpf ogt, %18, %19 : vector<128x64xf32>
    %c1_9 = arith.constant 1 : index
    %c0_10 = arith.constant 0 : index
    %21 = vector.load %arg5[%c1_9, %c0_10] : memref<2x64xf32, #tpu.memory_space<vmem>>, vector<1x64xf32>
    %22 = vector.broadcast %21 : vector<1x64xf32> to vector<128x64xf32>
    %23 = arith.mulf %22, %18 : vector<128x64xf32>
    %24 = arith.select %20, %18, %23 : vector<128x64xi1>, vector<128x64xf32>
    %25 = arith.truncf %24 : vector<128x64xf32> to vector<128x64xbf16>
    %c0_11 = arith.constant 0 : index
    %c0_12 = arith.constant 0 : index
    %26 = vector.load %arg2[%c0_11, %c0_12] : memref<128x64xbf16, #tpu.memory_space<vmem>>, vector<128x64xbf16>
    %27 = tpu.concatenate %26, %25 in 1 : vector<128x64xbf16>, vector<128x64xbf16> -> vector<128x128xbf16>
    %c0_13 = arith.constant 0 : index
    %c0_14 = arith.constant 0 : index
    %28 = vector.load %arg6[%c0_13, %c0_14] : memref<128x384xbf16, #tpu.memory_space<vmem>>, vector<128x384xbf16>
    %cst_15 = arith.constant dense<0.000000e+00> : vector<128x384xf32>
    %29 = tpu.matmul %27, %28, %cst_15 {dimension_numbers = #tpu.dot_dimension_numbers<[1], [0], [0], [1], [0, 0, 1, 1], [], []>} : vector<128x128xbf16>, vector<128x384xbf16>, vector<128x384xf32> -> vector<128x384xf32>
    %30 = vector.extract_strided_slice %29 {offsets = [0, 0], sizes = [128, 128], strides = [1, 1]} : vector<128x384xf32> to vector<128x128xf32>
    %c1_i32_16 = arith.constant 1 : i32
    %31 = tpu.dynamic_rotate %30 by %c1_i32_16 dim 0 : vector<128x128xf32>, i32 -> vector<128x128xf32>
    %32 = vector.broadcast %0 : vector<128x1xf32> to vector<128x128xf32>
    %33 = arith.mulf %31, %32 : vector<128x128xf32>
    %34 = vector.extract_strided_slice %29 {offsets = [0, 256], sizes = [128, 128], strides = [1, 1]} : vector<128x384xf32> to vector<128x128xf32>
    %c127_i32_17 = arith.constant 127 : i32
    %35 = tpu.dynamic_rotate %34 by %c127_i32_17 dim 0 : vector<128x128xf32>, i32 -> vector<128x128xf32>
    %36 = vector.broadcast %1 : vector<128x1xf32> to vector<128x128xf32>
    %37 = arith.mulf %35, %36 : vector<128x128xf32>
    %38 = vector.extract_strided_slice %29 {offsets = [0, 128], sizes = [128, 128], strides = [1, 1]} : vector<128x384xf32> to vector<128x128xf32>
    %39 = arith.addf %38, %33 : vector<128x128xf32>
    %40 = arith.addf %39, %37 : vector<128x128xf32>
    %c0_18 = arith.constant 0 : index
    %c0_19 = arith.constant 0 : index
    %41 = vector.load %arg7[%c0_18, %c0_19] : memref<2x128xf32, #tpu.memory_space<vmem>>, vector<1x128xf32>
    %42 = vector.broadcast %41 : vector<1x128xf32> to vector<128x128xf32>
    %43 = arith.addf %40, %42 : vector<128x128xf32>
    %cst_20 = arith.constant 0.000000e+00 : f32
    %44 = vector.broadcast %cst_20 : f32 to vector<128x128xf32>
    %45 = arith.cmpf ogt, %43, %44 : vector<128x128xf32>
    %c1_21 = arith.constant 1 : index
    %c0_22 = arith.constant 0 : index
    %46 = vector.load %arg7[%c1_21, %c0_22] : memref<2x128xf32, #tpu.memory_space<vmem>>, vector<1x128xf32>
    %47 = vector.broadcast %46 : vector<1x128xf32> to vector<128x128xf32>
    %48 = arith.mulf %47, %43 : vector<128x128xf32>
    %49 = arith.select %45, %43, %48 : vector<128x128xi1>, vector<128x128xf32>
    %50 = arith.truncf %49 : vector<128x128xf32> to vector<128x128xbf16>
    %c0_23 = arith.constant 0 : index
    %c0_24 = arith.constant 0 : index
    %51 = vector.load %arg8[%c0_23, %c0_24] : memref<128x384xbf16, #tpu.memory_space<vmem>>, vector<128x384xbf16>
    %cst_25 = arith.constant dense<0.000000e+00> : vector<128x384xf32>
    %52 = tpu.matmul %50, %51, %cst_25 {dimension_numbers = #tpu.dot_dimension_numbers<[1], [0], [0], [1], [0, 0, 1, 1], [], []>} : vector<128x128xbf16>, vector<128x384xbf16>, vector<128x384xf32> -> vector<128x384xf32>
    %53 = vector.extract_strided_slice %52 {offsets = [0, 0], sizes = [128, 128], strides = [1, 1]} : vector<128x384xf32> to vector<128x128xf32>
    %c1_i32_26 = arith.constant 1 : i32
    %54 = tpu.dynamic_rotate %53 by %c1_i32_26 dim 0 : vector<128x128xf32>, i32 -> vector<128x128xf32>
    %55 = vector.broadcast %0 : vector<128x1xf32> to vector<128x128xf32>
    %56 = arith.mulf %54, %55 : vector<128x128xf32>
    %57 = vector.extract_strided_slice %52 {offsets = [0, 256], sizes = [128, 128], strides = [1, 1]} : vector<128x384xf32> to vector<128x128xf32>
    %c127_i32_27 = arith.constant 127 : i32
    %58 = tpu.dynamic_rotate %57 by %c127_i32_27 dim 0 : vector<128x128xf32>, i32 -> vector<128x128xf32>
    %59 = vector.broadcast %1 : vector<128x1xf32> to vector<128x128xf32>
    %60 = arith.mulf %58, %59 : vector<128x128xf32>
    %61 = vector.extract_strided_slice %52 {offsets = [0, 128], sizes = [128, 128], strides = [1, 1]} : vector<128x384xf32> to vector<128x128xf32>
    %62 = arith.addf %61, %56 : vector<128x128xf32>
    %63 = arith.addf %62, %60 : vector<128x128xf32>
    %c0_28 = arith.constant 0 : index
    %c0_29 = arith.constant 0 : index
    %64 = vector.load %arg9[%c0_28, %c0_29] : memref<2x128xf32, #tpu.memory_space<vmem>>, vector<1x128xf32>
    %65 = vector.broadcast %64 : vector<1x128xf32> to vector<128x128xf32>
    %66 = arith.addf %63, %65 : vector<128x128xf32>
    %cst_30 = arith.constant 0.000000e+00 : f32
    %67 = vector.broadcast %cst_30 : f32 to vector<128x128xf32>
    %68 = arith.cmpf ogt, %66, %67 : vector<128x128xf32>
    %c1_31 = arith.constant 1 : index
    %c0_32 = arith.constant 0 : index
    %69 = vector.load %arg9[%c1_31, %c0_32] : memref<2x128xf32, #tpu.memory_space<vmem>>, vector<1x128xf32>
    %70 = vector.broadcast %69 : vector<1x128xf32> to vector<128x128xf32>
    %71 = arith.mulf %70, %66 : vector<128x128xf32>
    %72 = arith.select %68, %66, %71 : vector<128x128xi1>, vector<128x128xf32>
    %73 = arith.truncf %72 : vector<128x128xf32> to vector<128x128xbf16>
    %c0_33 = arith.constant 0 : index
    %c0_34 = arith.constant 0 : index
    %74 = vector.load %arg10[%c0_33, %c0_34] : memref<128x384xbf16, #tpu.memory_space<vmem>>, vector<128x384xbf16>
    %cst_35 = arith.constant dense<0.000000e+00> : vector<128x384xf32>
    %75 = tpu.matmul %73, %74, %cst_35 {dimension_numbers = #tpu.dot_dimension_numbers<[1], [0], [0], [1], [0, 0, 1, 1], [], []>} : vector<128x128xbf16>, vector<128x384xbf16>, vector<128x384xf32> -> vector<128x384xf32>
    %76 = vector.extract_strided_slice %75 {offsets = [0, 0], sizes = [128, 128], strides = [1, 1]} : vector<128x384xf32> to vector<128x128xf32>
    %c1_i32_36 = arith.constant 1 : i32
    %77 = tpu.dynamic_rotate %76 by %c1_i32_36 dim 0 : vector<128x128xf32>, i32 -> vector<128x128xf32>
    %78 = vector.broadcast %0 : vector<128x1xf32> to vector<128x128xf32>
    %79 = arith.mulf %77, %78 : vector<128x128xf32>
    %80 = vector.extract_strided_slice %75 {offsets = [0, 256], sizes = [128, 128], strides = [1, 1]} : vector<128x384xf32> to vector<128x128xf32>
    %c127_i32_37 = arith.constant 127 : i32
    %81 = tpu.dynamic_rotate %80 by %c127_i32_37 dim 0 : vector<128x128xf32>, i32 -> vector<128x128xf32>
    %82 = vector.broadcast %1 : vector<128x1xf32> to vector<128x128xf32>
    %83 = arith.mulf %81, %82 : vector<128x128xf32>
    %84 = vector.extract_strided_slice %75 {offsets = [0, 128], sizes = [128, 128], strides = [1, 1]} : vector<128x384xf32> to vector<128x128xf32>
    %85 = arith.addf %84, %79 : vector<128x128xf32>
    %86 = arith.addf %85, %83 : vector<128x128xf32>
    %c0_38 = arith.constant 0 : index
    %c0_39 = arith.constant 0 : index
    %87 = vector.load %arg11[%c0_38, %c0_39] : memref<2x128xf32, #tpu.memory_space<vmem>>, vector<1x128xf32>
    %88 = vector.broadcast %87 : vector<1x128xf32> to vector<128x128xf32>
    %89 = arith.addf %86, %88 : vector<128x128xf32>
    %cst_40 = arith.constant 0.000000e+00 : f32
    %90 = vector.broadcast %cst_40 : f32 to vector<128x128xf32>
    %91 = arith.cmpf ogt, %89, %90 : vector<128x128xf32>
    %c1_41 = arith.constant 1 : index
    %c0_42 = arith.constant 0 : index
    %92 = vector.load %arg11[%c1_41, %c0_42] : memref<2x128xf32, #tpu.memory_space<vmem>>, vector<1x128xf32>
    %93 = vector.broadcast %92 : vector<1x128xf32> to vector<128x128xf32>
    %94 = arith.mulf %93, %89 : vector<128x128xf32>
    %95 = arith.select %91, %89, %94 : vector<128x128xi1>, vector<128x128xf32>
    %c0_43 = arith.constant 0 : index
    %c0_44 = arith.constant 0 : index
    %96 = vector.load %arg12[%c0_43, %c0_44] : memref<128x128xbf16, #tpu.memory_space<vmem>>, vector<128x128xbf16>
    %cst_45 = arith.constant dense<0.000000e+00> : vector<128x128xf32>
    %97 = tpu.matmul %50, %96, %cst_45 {dimension_numbers = #tpu.dot_dimension_numbers<[1], [0], [0], [1], [0, 0, 1, 1], [], []>} : vector<128x128xbf16>, vector<128x128xbf16>, vector<128x128xf32> -> vector<128x128xf32>
    %c0_46 = arith.constant 0 : index
    %c0_47 = arith.constant 0 : index
    %98 = vector.load %arg13[%c0_46, %c0_47] : memref<1x128xf32, #tpu.memory_space<vmem>>, vector<1x128xf32>
    %99 = vector.broadcast %98 : vector<1x128xf32> to vector<128x128xf32>
    %100 = arith.addf %97, %99 : vector<128x128xf32>
    %101 = arith.addf %100, %95 : vector<128x128xf32>
    %c0_48 = arith.constant 0 : index
    %c0_49 = arith.constant 0 : index
    %102 = vector.load %arg14[%c0_48, %c0_49] : memref<128x128xf32, #tpu.memory_space<vmem>>, vector<128x128xf32>
    tpu.vector_store %arg14[%c0_48, %c0_49], %101 {strides = array<i32>} : memref<128x128xf32, #tpu.memory_space<vmem>>, vector<128x128xf32>,
    return
  }
  func.func @transform_0(%arg0: i32) -> (i32, i32) {
    %c0_i32 = arith.constant 0 : i32
    %c0_i32_0 = arith.constant 0 : i32
    return %arg0, %c0_i32 : i32, i32
  }
  func.func @transform_1(%arg0: i32) -> (i32, i32) {
    %c0_i32 = arith.constant 0 : i32
    %c0_i32_0 = arith.constant 0 : i32
    return %arg0, %c0_i32 : i32, i32
  }
  func.func @transform_2(%arg0: i32) -> (i32, i32) {
    %c0_i32 = arith.constant 0 : i32
    %c0_i32_0 = arith.constant 0 : i32
    %c0_i32_1 = arith.constant 0 : i32
    return %c0_i32, %c0_i32_0 : i32, i32
  }
  func.func @transform_3(%arg0: i32) -> (i32, i32) {
    %c0_i32 = arith.constant 0 : i32
    %c0_i32_0 = arith.constant 0 : i32
    %c0_i32_1 = arith.constant 0 : i32
    return %c0_i32, %c0_i32_0 : i32, i32
  }
  func.func @transform_4(%arg0: i32) -> (i32, i32) {
    %c0_i32 = arith.constant 0 : i32
    %c0_i32_0 = arith.constant 0 : i32
    %c0_i32_1 = arith.constant 0 : i32
    return %c0_i32, %c0_i32_0 : i32, i32
  }
  func.func @transform_5(%arg0: i32) -> (i32, i32) {
    %c0_i32 = arith.constant 0 : i32
    %c0_i32_0 = arith.constant 0 : i32
    %c0_i32_1 = arith.constant 0 : i32
    return %c0_i32, %c0_i32_0 : i32, i32
  }
  func.func @transform_6(%arg0: i32) -> (i32, i32) {
    %c0_i32 = arith.constant 0 : i32
    %c0_i32_0 = arith.constant 0 : i32
    %c0_i32_1 = arith.constant 0 : i32
    return %c0_i32, %c0_i32_0 : i32, i32
  }
  func.func @transform_7(%arg0: i32) -> (i32, i32) {
    %c0_i32 = arith.constant 0 : i32
    %c0_i32_0 = arith.constant 0 : i32
    %c0_i32_1 = arith.constant 0 : i32
    return %c0_i32, %c0_i32_0 : i32, i32
  }
  func.func @transform_8(%arg0: i32) -> (i32, i32) {
    %c0_i32 = arith.constant 0 : i32
    %c0_i32_0 = arith.constant 0 : i32
    %c0_i32_1 = arith.constant 0 : i32
    return %c0_i32, %c0_i32_0 : i32, i32
  }
  func.func @transform_9(%arg0: i32) -> (i32, i32) {
    %c0_i32 = arith.constant 0 : i32
    %c0_i32_0 = arith.constant 0 : i32
    %c0_i32_1 = arith.constant 0 : i32
    return %c0_i32, %c0_i32_0 : i32, i32
  }
  func.func @transform_10(%arg0: i32) -> (i32, i32) {
    %c0_i32 = arith.constant 0 : i32
    %c0_i32_0 = arith.constant 0 : i32
    %c0_i32_1 = arith.constant 0 : i32
    return %c0_i32, %c0_i32_0 : i32, i32
  }
  func.func @transform_11(%arg0: i32) -> (i32, i32) {
    %c0_i32 = arith.constant 0 : i32
    %c0_i32_0 = arith.constant 0 : i32
    %c0_i32_1 = arith.constant 0 : i32
    return %c0_i32, %c0_i32_0 : i32, i32
  }
  func.func @transform_12(%arg0: i32) -> (i32, i32) {
    %c0_i32 = arith.constant 0 : i32
    %c0_i32_0 = arith.constant 0 : i32
    %c0_i32_1 = arith.constant 0 : i32
    return %c0_i32, %c0_i32_0 : i32, i32
  }
  func.func @transform_13(%arg0: i32) -> (i32, i32) {
    %c0_i32 = arith.constant 0 : i32
    %c0_i32_0 = arith.constant 0 : i32
    return %arg0, %c0_i32 : i32, i32
  }
}

</mosaic_0001>

<llo_original>
// kernel: conv_up_block_forward.1
$region0: #{conv_up_block_forward.1}
  #allocation0 [shape = 'u32[]', space=smem, size = 0x4, offset = 0x4, fixed_abs, tag = 'smem constant byte address 0x4 - core index']
  #allocation1 [shape = 'u32[72,128]{1,0:T(1,128)}', space=vmem, size = 0x9000, scoped, tag = 'internal scratch']
  %s0 = inlined_call_operand.vmem [shape: bf16[256,32], index: 0, kind: input, shape index: {}]
  %s1 = inlined_call_operand.vmem [shape: bf16[256,64], index: 1, kind: input, shape index: {}]
  %s2 = inlined_call_operand.vmem [shape: f32[128,2], index: 2, kind: input, shape index: {}]
  %s3 = inlined_call_operand.vmem [shape: bf16[32,192], index: 3, kind: input, shape index: {}]
  %s4 = inlined_call_operand.vmem [shape: f32[2,64], index: 4, kind: input, shape index: {}]
  %s5 = inlined_call_operand.vmem [shape: bf16[128,384], index: 5, kind: input, shape index: {}]
  %s6 = inlined_call_operand.vmem [shape: f32[2,128], index: 6, kind: input, shape index: {}]
  %s7 = inlined_call_operand.vmem [shape: bf16[128,384], index: 7, kind: input, shape index: {}]
  %s8 = inlined_call_operand.vmem [shape: f32[2,128], index: 8, kind: input, shape index: {}]
  %s9 = inlined_call_operand.vmem [shape: bf16[128,384], index: 9, kind: input, shape index: {}]
  %s10 = inlined_call_operand.vmem [shape: f32[2,128], index: 10, kind: input, shape index: {}]
  %s11 = inlined_call_operand.vmem [shape: bf16[128,128], index: 11, kind: input, shape index: {}]
  %s12 = inlined_call_operand.vmem [shape: f32[1,128], index: 12, kind: input, shape index: {}]
  %s13 = inlined_call_operand.vmem [shape: f32[256,128], index: 13, kind: output, shape index: {}]
  %s14 = sld [smem:[#allocation0]]
  $region85: #{conv_up_block_forward.1} parent=0
    _
  %s16 = ssub.s32 1, %s14
  %s17 = scalar_select 0, %s16, %s14
  loop: start=0, step=1, limit=4
  $region2: #{conv_up_block_forward.1} parent=0 // loop_pre_header
    _
  $region3: #{conv_up_block_forward.1} parent=0 // loop_header
    %s19 = sphi 0, %s23
    %p20 = scmp.ge.s32.totalorder %s19, 4
    %s29 = sphi 0, %s31
    %s32 = sphi 0, %s29
    %s33 = sphi 0, %s32
    %s49 = sphi 0, %s33
    %s55 = sphi 0, %s57
    %s58 = sphi 0, %s55
    %s59 = sphi 0, %s58
    %s75 = sphi 0, %s59
    %s79 = sphi 0, %s79
    %s81 = sphi 0, %s79
    %s82 = sphi 0, %s81
    %s96 = sphi 0, %s82
    %s100 = sphi 0, %s100
    %s102 = sphi 0, %s100
    %s103 = sphi 0, %s102
    %s117 = sphi 0, %s103
    %s121 = sphi 0, %s121
    %s123 = sphi 0, %s121
    %s124 = sphi 0, %s123
    %s138 = sphi 0, %s124
    %s142 = sphi 0, %s142
    %s144 = sphi 0, %s142
    %s145 = sphi 0, %s144
    %s159 = sphi 0, %s145
    %s163 = sphi 0, %s163
    %s165 = sphi 0, %s163
    %s166 = sphi 0, %s165
    %s180 = sphi 0, %s166
    %s184 = sphi 0, %s184
    %s186 = sphi 0, %s184
    %s187 = sphi 0, %s186
    %s201 = sphi 0, %s187
    %s205 = sphi 0, %s205
    %s207 = sphi 0, %s205
    %s208 = sphi 0, %s207
    %s222 = sphi 0, %s208
    %s226 = sphi 0, %s226
    %s228 = sphi 0, %s226
    %s229 = sphi 0, %s228
    %s243 = sphi 0, %s229
    %s247 = sphi 0, %s247
    %s249 = sphi 0, %s247
    %s250 = sphi 0, %s249
    %s264 = sphi 0, %s250
    %s268 = sphi 0, %s268
    %s270 = sphi 0, %s268
    %s271 = sphi 0, %s270
    %s285 = sphi 0, %s271
    %s289 = sphi 0, %s289
    %s291 = sphi 0, %s289
    %s292 = sphi 0, %s291
    %s306 = sphi 0, %s292
    %s312 = sphi 0, %s314
    %s315 = sphi 0, %s312
    %s316 = sphi 0, %s315
    %s332 = sphi 0, %s316
  $region4: #{conv_up_block_forward.1} parent=0 // loop_header_branch
    %22 = sbr.rel (%p20) target = $region8
  $region5: #{conv_up_block_forward.1} parent=0 // loop_body
    %s24 = ssub.s32 %s19, 1
    %s25 = ssub.s32 %s19, 2
    %s26 = sadd.s32 %s19, 1
    %s27 = ssub.s32 %s19, %s26
    %p28 = scmp.eq.s32.totalorder %s27, 0
    %s30 = sadd.s32 %s29, 1
    %s31 = scalar_select %p28, %s29, %s30
    %p34 = pneg %p28
    %p35 = scmp.eq.s32.totalorder %s19, 1
    %p36 = por %p34, %p35
    %p37 = scmp.ne.s32.totalorder %s29, %s32
    %p38 = scmp.eq.s32.totalorder %s19, 0
    %p39 = por %p37, %p38
    %p40 = scmp.ne.s32.totalorder %s29, %s32
    %p41 = scmp.eq.s32.totalorder %s24, 1
    %p42 = por %p40, %p41
    %p43 = scmp.ne.s32.totalorder %s32, %s33
    %p44 = scmp.eq.s32.totalorder %s24, 0
    %p45 = por %p43, %p44
    %p46 = scmp.ne.s32.totalorder %s32, %s33
    %p47 = scmp.eq.s32.totalorder %s25, 1
    %p48 = por %p46, %p47
    %p50 = scmp.ne.s32.totalorder %s33, %s49
    %p51 = scmp.eq.s32.totalorder %s25, 0
    %p52 = por %p50, %p51
    %s53 = ssub.s32 %s19, %s26
    %p54 = scmp.eq.s32.totalorder %s53, 0
    %s56 = sadd.s32 %s55, 1
    %s57 = scalar_select %p54, %s55, %s56
    %p60 = pneg %p54
    %p61 = scmp.eq.s32.totalorder %s19, 1
    %p62 = por %p60, %p61
    %p63 = scmp.ne.s32.totalorder %s55, %s58
    %p64 = scmp.eq.s32.totalorder %s19, 0
    %p65 = por %p63, %p64
    %p66 = scmp.ne.s32.totalorder %s55, %s58
    %p67 = scmp.eq.s32.totalorder %s24, 1
    %p68 = por %p66, %p67
    %p69 = scmp.ne.s32.totalorder %s58, %s59
    %p70 = scmp.eq.s32.totalorder %s24, 0
    %p71 = por %p69, %p70
    %p72 = scmp.ne.s32.totalorder %s58, %s59
    %p73 = scmp.eq.s32.totalorder %s25, 1
    %p74 = por %p72, %p73
    %p76 = scmp.ne.s32.totalorder %s59, %s75
    %p77 = scmp.eq.s32.totalorder %s25, 0
    %p78 = por %p76, %p77
    %s80 = sadd.s32 %s79, 1
    %p83 = scmp.eq.s32.totalorder %s19, 1
    %p84 = scmp.ne.s32.totalorder %s79, %s81
    %p85 = scmp.eq.s32.totalorder %s19, 0
    %p86 = por %p84, %p85
    %p87 = scmp.ne.s32.totalorder %s79, %s81
    %p88 = scmp.eq.s32.totalorder %s24, 1
    %p89 = por %p87, %p88
    %p90 = scmp.ne.s32.totalorder %s81, %s82
    %p91 = scmp.eq.s32.totalorder %s24, 0
    %p92 = por %p90, %p91
    %p93 = scmp.ne.s32.totalorder %s81, %s82
    %p94 = scmp.eq.s32.totalorder %s25, 1
    %p95 = por %p93, %p94
    %p97 = scmp.ne.s32.totalorder %s82, %s96
    %p98 = scmp.eq.s32.totalorder %s25, 0
    %p99 = por %p97, %p98
    %s101 = sadd.s32 %s100, 1
    %p104 = scmp.eq.s32.totalorder %s19, 1
    %p105 = scmp.ne.s32.totalorder %s100, %s102
    %p106 = scmp.eq.s32.totalorder %s19, 0
    %p107 = por %p105, %p106
    %p108 = scmp.ne.s32.totalorder %s100, %s102
    %p109 = scmp.eq.s32.totalorder %s24, 1
    %p110 = por %p108, %p109
    %p111 = scmp.ne.s32.totalorder %s102, %s103
    %p112 = scmp.eq.s32.totalorder %s24, 0
    %p113 = por %p111, %p112
    %p114 = scmp.ne.s32.totalorder %s102, %s103
    %p115 = scmp.eq.s32.totalorder %s25, 1
    %p116 = por %p114, %p115
    %p118 = scmp.ne.s32.totalorder %s103, %s117
    %p119 = scmp.eq.s32.totalorder %s25, 0
    %p120 = por %p118, %p119
    %s122 = sadd.s32 %s121, 1
    %p125 = scmp.eq.s32.totalorder %s19, 1
    %p126 = scmp.ne.s32.totalorder %s121, %s123
    %p127 = scmp.eq.s32.totalorder %s19, 0
    %p128 = por %p126, %p127
    %p129 = scmp.ne.s32.totalorder %s121, %s123
    %p130 = scmp.eq.s32.totalorder %s24, 1
    %p131 = por %p129, %p130
    %p132 = scmp.ne.s32.totalorder %s123, %s124
    %p133 = scmp.eq.s32.totalorder %s24, 0
    %p134 = por %p132, %p133
    %p135 = scmp.ne.s32.totalorder %s123, %s124
    %p136 = scmp.eq.s32.totalorder %s25, 1
    %p137 = por %p135, %p136
    %p139 = scmp.ne.s32.totalorder %s124, %s138
    %p140 = scmp.eq.s32.totalorder %s25, 0
    %p141 = por %p139, %p140
    %s143 = sadd.s32 %s142, 1
    %p146 = scmp.eq.s32.totalorder %s19, 1
    %p147 = scmp.ne.s32.totalorder %s142, %s144
    %p148 = scmp.eq.s32.totalorder %s19, 0
    %p149 = por %p147, %p148
    %p150 = scmp.ne.s32.totalorder %s142, %s144
    %p151 = scmp.eq.s32.totalorder %s24, 1
    %p152 = por %p150, %p151
    %p153 = scmp.ne.s32.totalorder %s144, %s145
    %p154 = scmp.eq.s32.totalorder %s24, 0
    %p155 = por %p153, %p154
    %p156 = scmp.ne.s32.totalorder %s144, %s145
    %p157 = scmp.eq.s32.totalorder %s25, 1
    %p158 = por %p156, %p157
    %p160 = scmp.ne.s32.totalorder %s145, %s159
    %p161 = scmp.eq.s32.totalorder %s25, 0
    %p162 = por %p160, %p161
    %s164 = sadd.s32 %s163, 1
    %p167 = scmp.eq.s32.totalorder %s19, 1
    %p168 = scmp.ne.s32.totalorder %s163, %s165
    %p169 = scmp.eq.s32.totalorder %s19, 0
    %p170 = por %p168, %p169
    %p171 = scmp.ne.s32.totalorder %s163, %s165
    %p172 = scmp.eq.s32.totalorder %s24, 1
    %p173 = por %p171, %p172
    %p174 = scmp.ne.s32.totalorder %s165, %s166
    %p175 = scmp.eq.s32.totalorder %s24, 0
    %p176 = por %p174, %p175
    %p177 = scmp.ne.s32.totalorder %s165, %s166
    %p178 = scmp.eq.s32.totalorder %s25, 1
    %p179 = por %p177, %p178
    %p181 = scmp.ne.s32.totalorder %s166, %s180
    %p182 = scmp.eq.s32.totalorder %s25, 0
    %p183 = por %p181, %p182
    %s185 = sadd.s32 %s184, 1
    %p188 = scmp.eq.s32.totalorder %s19, 1
    %p189 = scmp.ne.s32.totalorder %s184, %s186
    %p190 = scmp.eq.s32.totalorder %s19, 0
    %p191 = por %p189, %p190
    %p192 = scmp.ne.s32.totalorder %s184, %s186
    %p193 = scmp.eq.s32.totalorder %s24, 1
    %p194 = por %p192, %p193
    %p195 = scmp.ne.s32.totalorder %s186, %s187
    %p196 = scmp.eq.s32.totalorder %s24, 0
    %p197 = por %p195, %p196
    %p198 = scmp.ne.s32.totalorder %s186, %s187
    %p199 = scmp.eq.s32.totalorder %s25, 1
    %p200 = por %p198, %p199
    %p202 = scmp.ne.s32.totalorder %s187, %s201
    %p203 = scmp.eq.s32.totalorder %s25, 0
    %p204 = por %p202, %p203
    %s206 = sadd.s32 %s205, 1
    %p209 = scmp.eq.s32.totalorder %s19, 1
    %p210 = scmp.ne.s32.totalorder %s205, %s207
    %p211 = scmp.eq.s32.totalorder %s19, 0
    %p212 = por %p210, %p211
    %p213 = scmp.ne.s32.totalorder %s205, %s207
    %p214 = scmp.eq.s32.totalorder %s24, 1
    %p215 = por %p213, %p214
    %p216 = scmp.ne.s32.totalorder %s207, %s208
    %p217 = scmp.eq.s32.totalorder %s24, 0
    %p218 = por %p216, %p217
    %p219 = scmp.ne.s32.totalorder %s207, %s208
    %p220 = scmp.eq.s32.totalorder %s25, 1
    %p221 = por %p219, %p220
    %p223 = scmp.ne.s32.totalorder %s208, %s222
    %p224 = scmp.eq.s32.totalorder %s25, 0
    %p225 = por %p223, %p224
    %s227 = sadd.s32 %s226, 1
    %p230 = scmp.eq.s32.totalorder %s19, 1
    %p231 = scmp.ne.s32.totalorder %s226, %s228
    %p232 = scmp.eq.s32.totalorder %s19, 0
    %p233 = por %p231, %p232
    %p234 = scmp.ne.s32.totalorder %s226, %s228
    %p235 = scmp.eq.s32.totalorder %s24, 1
    %p236 = por %p234, %p235
    %p237 = scmp.ne.s32.totalorder %s228, %s229
    %p238 = scmp.eq.s32.totalorder %s24, 0
    %p239 = por %p237, %p238
    %p240 = scmp.ne.s32.totalorder %s228, %s229
    %p241 = scmp.eq.s32.totalorder %s25, 1
    %p242 = por %p240, %p241
    %p244 = scmp.ne.s32.totalorder %s229, %s243
    %p245 = scmp.eq.s32.totalorder %s25, 0
    %p246 = por %p244, %p245
    %s248 = sadd.s32 %s247, 1
    %p251 = scmp.eq.s32.totalorder %s19, 1
    %p252 = scmp.ne.s32.totalorder %s247, %s249
    %p253 = scmp.eq.s32.totalorder %s19, 0
    %p254 = por %p252, %p253
    %p255 = scmp.ne.s32.totalorder %s247, %s249
    %p256 = scmp.eq.s32.totalorder %s24, 1
    %p257 = por %p255, %p256
    %p258 = scmp.ne.s32.totalorder %s249, %s250
    %p259 = scmp.eq.s32.totalorder %s24, 0
    %p260 = por %p258, %p259
    %p261 = scmp.ne.s32.totalorder %s249, %s250
    %p262 = scmp.eq.s32.totalorder %s25, 1
    %p263 = por %p261, %p262
    %p265 = scmp.ne.s32.totalorder %s250, %s264
    %p266 = scmp.eq.s32.totalorder %s25, 0
    %p267 = por %p265, %p266
    %s269 = sadd.s32 %s268, 1
    %p272 = scmp.eq.s32.totalorder %s19, 1
    %p273 = scmp.ne.s32.totalorder %s268, %s270
    %p274 = scmp.eq.s32.totalorder %s19, 0
    %p275 = por %p273, %p274
    %p276 = scmp.ne.s32.totalorder %s268, %s270
    %p277 = scmp.eq.s32.totalorder %s24, 1
    %p278 = por %p276, %p277
    %p279 = scmp.ne.s32.totalorder %s270, %s271
    %p280 = scmp.eq.s32.totalorder %s24, 0
    %p281 = por %p279, %p280
    %p282 = scmp.ne.s32.totalorder %s270, %s271
    %p283 = scmp.eq.s32.totalorder %s25, 1
    %p284 = por %p282, %p283
    %p286 = scmp.ne.s32.totalorder %s271, %s285
    %p287 = scmp.eq.s32.totalorder %s25, 0
    %p288 = por %p286, %p287
    %s290 = sadd.s32 %s289, 1
    %p293 = scmp.eq.s32.totalorder %s19, 1
    %p294 = scmp.ne.s32.totalorder %s289, %s291
    %p295 = scmp.eq.s32.totalorder %s19, 0
    %p296 = por %p294, %p295
    %p297 = scmp.ne.s32.totalorder %s289, %s291
    %p298 = scmp.eq.s32.totalorder %s24, 1
    %p299 = por %p297, %p298
    %p300 = scmp.ne.s32.totalorder %s291, %s292
    %p301 = scmp.eq.s32.totalorder %s24, 0
    %p302 = por %p300, %p301
    %p303 = scmp.ne.s32.totalorder %s291, %s292
    %p304 = scmp.eq.s32.totalorder %s25, 1
    %p305 = por %p303, %p304
    %p307 = scmp.ne.s32.totalorder %s292, %s306
    %p308 = scmp.eq.s32.totalorder %s25, 0
    %p309 = por %p307, %p308
    %s310 = ssub.s32 %s19, %s26
    %p311 = scmp.eq.s32.totalorder %s310, 0
    %s313 = sadd.s32 %s312, 1
    %s314 = scalar_select %p311, %s312, %s313
    %p317 = pneg %p311
    %p318 = scmp.eq.s32.totalorder %s19, 1
    %p319 = por %p317, %p318
    %p320 = scmp.ne.s32.totalorder %s312, %s315
    %p321 = scmp.eq.s32.totalorder %s19, 0
    %p322 = por %p320, %p321
    %p323 = scmp.ne.s32.totalorder %s312, %s315
    %p324 = scmp.eq.s32.totalorder %s24, 1
    %p325 = por %p323, %p324
    %p326 = scmp.ne.s32.totalorder %s315, %s316
    %p327 = scmp.eq.s32.totalorder %s24, 0
    %p328 = por %p326, %p327
    %p329 = scmp.ne.s32.totalorder %s315, %s316
    %p330 = scmp.eq.s32.totalorder %s25, 1
    %p331 = por %p329, %p330
    %p333 = scmp.ne.s32.totalorder %s316, %s332
    %p334 = scmp.eq.s32.totalorder %s25, 0
    %p335 = por %p333, %p334
    %p336 = scmp.le.s32.totalorder 1, %s19
    %p337 = scmp.lt.s32.totalorder %s19, 3
    %p338 = pnand %p336, %p337
    %p339 = pneg %p338
    // Predicated region
    $region9: #{conv_up_block_forward.1} parent=5 // pred_check
      _
    $region10: #{conv_up_block_forward.1} parent=5 // pred_check_branch
      %341 = sbr.rel (%p338) target = $region12
    $region11: #{conv_up_block_forward.1} parent=5 // pred_region
      %s342 = ssub.s32 %s19, 1
      // Predicated region
      $region13: #{conv_up_block_forward.1} parent=11 // pred_check
        %p343 = pneg %p92
      $region14: #{conv_up_block_forward.1} parent=11 // pred_check_branch
        %345 = sbr.rel (%p343) target = $region16
      $region15: #{conv_up_block_forward.1} parent=11 // pred_region
        _
      $region16: #{conv_up_block_forward.1} parent=11 // pred_fallthru
        _
      // Predicated region
      $region17: #{conv_up_block_forward.1} parent=11 // pred_check
        %p346 = pneg %p113
      $region18: #{conv_up_block_forward.1} parent=11 // pred_check_branch
        %348 = sbr.rel (%p346) target = $region20
      $region19: #{conv_up_block_forward.1} parent=11 // pred_region
        _
      $region20: #{conv_up_block_forward.1} parent=11 // pred_fallthru
        _
      // Predicated region
      $region21: #{conv_up_block_forward.1} parent=11 // pred_check
        %p349 = pneg %p134
      $region22: #{conv_up_block_forward.1} parent=11 // pred_check_branch
        %351 = sbr.rel (%p349) target = $region24
      $region23: #{conv_up_block_forward.1} parent=11 // pred_region
        _
      $region24: #{conv_up_block_forward.1} parent=11 // pred_fallthru
        _
      // Predicated region
      $region25: #{conv_up_block_forward.1} parent=11 // pred_check
        %p352 = pneg %p155
      $region26: #{conv_up_block_forward.1} parent=11 // pred_check_branch
        %354 = sbr.rel (%p352) target = $region28
      $region27: #{conv_up_block_forward.1} parent=11 // pred_region
        _
      $region28: #{conv_up_block_forward.1} parent=11 // pred_fallthru
        _
      // Predicated region
      $region29: #{conv_up_block_forward.1} parent=11 // pred_check
        %p355 = pneg %p176
      $region30: #{conv_up_block_forward.1} parent=11 // pred_check_branch
        %357 = sbr.rel (%p355) target = $region32
      $region31: #{conv_up_block_forward.1} parent=11 // pred_region
        _
      $region32: #{conv_up_block_forward.1} parent=11 // pred_fallthru
        _
      // Predicated region
      $region33: #{conv_up_block_forward.1} parent=11 // pred_check
        %p358 = pneg %p197
      $region34: #{conv_up_block_forward.1} parent=11 // pred_check_branch
        %360 = sbr.rel (%p358) target = $region36
      $region35: #{conv_up_block_forward.1} parent=11 // pred_region
        _
      $region36: #{conv_up_block_forward.1} parent=11 // pred_fallthru
        _
      // Predicated region
      $region37: #{conv_up_block_forward.1} parent=11 // pred_check
        %p361 = pneg %p218
      $region38: #{conv_up_block_forward.1} parent=11 // pred_check_branch
        %363 = sbr.rel (%p361) target = $region40
      $region39: #{conv_up_block_forward.1} parent=11 // pred_region
        _
      $region40: #{conv_up_block_forward.1} parent=11 // pred_fallthru
        _
      // Predicated region
      $region41: #{conv_up_block_forward.1} parent=11 // pred_check
        %p364 = pneg %p239
      $region42: #{conv_up_block_forward.1} parent=11 // pred_check_branch
        %366 = sbr.rel (%p364) target = $region44
      $region43: #{conv_up_block_forward.1} parent=11 // pred_region
        _
      $region44: #{conv_up_block_forward.1} parent=11 // pred_fallthru
        _
      // Predicated region
      $region45: #{conv_up_block_forward.1} parent=11 // pred_check
        %p367 = pneg %p260
      $region46: #{conv_up_block_forward.1} parent=11 // pred_check_branch
        %369 = sbr.rel (%p367) target = $region48
      $region47: #{conv_up_block_forward.1} parent=11 // pred_region
        _
      $region48: #{conv_up_block_forward.1} parent=11 // pred_fallthru
        _
      // Predicated region
      $region49: #{conv_up_block_forward.1} parent=11 // pred_check
        %p370 = pneg %p281
      $region50: #{conv_up_block_forward.1} parent=11 // pred_check_branch
        %372 = sbr.rel (%p370) target = $region52
      $region51: #{conv_up_block_forward.1} parent=11 // pred_region
        _
      $region52: #{conv_up_block_forward.1} parent=11 // pred_fallthru
        _
      // Predicated region
      $region53: #{conv_up_block_forward.1} parent=11 // pred_check
        %p373 = pneg %p302
      $region54: #{conv_up_block_forward.1} parent=11 // pred_check_branch
        %375 = sbr.rel (%p373) target = $region56
      $region55: #{conv_up_block_forward.1} parent=11 // pred_region
        _
      $region56: #{conv_up_block_forward.1} parent=11 // pred_fallthru
        _
    $region12: #{conv_up_block_forward.1} parent=5 // pred_fallthru
      _
    %p376 = scmp.lt.s32.totalorder %s19, 2
    // Predicated region
    $region57: #{conv_up_block_forward.1} parent=5 // pred_check
      %p377 = pneg %p376
    $region58: #{conv_up_block_forward.1} parent=5 // pred_check_branch
      %379 = sbr.rel (%p377) target = $region60
    $region59: #{conv_up_block_forward.1} parent=5 // pred_region
      // Predicated region
      $region61: #{conv_up_block_forward.1} parent=59 // pred_check
        %p380 = pneg %p39
      $region62: #{conv_up_block_forward.1} parent=59 // pred_check_branch
        %382 = sbr.rel (%p380) target = $region64
      $region63: #{conv_up_block_forward.1} parent=59 // pred_region
        %s383 = smul.u32 16, %s19
        %p384 = scmp.lt.s32.totalorder %s383, 31
        %s385 = scalar_select %p384, %s383, 31
        %s386 = smul.addr %s385, 4
        %s387 = scalar_lea.vmem %s0, %s386
        %s388 = smul.u32 16, %s19
      $region64: #{conv_up_block_forward.1} parent=59 // pred_fallthru
        _
      // Predicated region
      $region65: #{conv_up_block_forward.1} parent=59 // pred_check
        %p389 = pneg %p65
      $region66: #{conv_up_block_forward.1} parent=59 // pred_check_branch
        %391 = sbr.rel (%p389) target = $region68
      $region67: #{conv_up_block_forward.1} parent=59 // pred_region
        %s392 = smul.u32 16, %s19
        %p393 = scmp.lt.s32.totalorder %s392, 31
        %s394 = scalar_select %p393, %s392, 31
        %s395 = smul.addr %s394, 4
        %s396 = scalar_lea.vmem %s1, %s395
        %s397 = smul.u32 16, %s19
      $region68: #{conv_up_block_forward.1} parent=59 // pred_fallthru
        _
    $region60: #{conv_up_block_forward.1} parent=5 // pred_fallthru
      _
    %p398 = scmp.le.s32.totalorder 1, %s19
    %p399 = scmp.lt.s32.totalorder %s19, 3
    %p400 = pnand %p398, %p399
    %p401 = pneg %p400
    // Predicated region
    $region69: #{conv_up_block_forward.1} parent=5 // pred_check
      _
    $region70: #{conv_up_block_forward.1} parent=5 // pred_check_branch
      %403 = sbr.rel (%p400) target = $region72
    $region71: #{conv_up_block_forward.1} parent=5 // pred_region
      %s404 = ssub.s32 %s19, 1
      %s405 = smul.u32 16, %s24
      %p406 = scmp.lt.s32.totalorder %s405, 31
      %s407 = scalar_select %p406, %s405, 31
      %s408 = smul.addr %s407, 4
      %s409 = scalar_lea.vmem %s0, %s408
      %p410 = pneg %p45
      %p411 = pneg %p42
      %s412 = smul.u32 16, %s24
      %p413 = scmp.lt.s32.totalorder %s412, 31
      %s414 = scalar_select %p413, %s412, 31
      %s415 = smul.addr %s414, 4
      %s416 = scalar_lea.vmem %s1, %s415
      %p417 = pneg %p71
      %p418 = pneg %p68
      %p419 = pneg %p92
      %p420 = pneg %p89
      %p421 = pneg %p113
      %p422 = pneg %p110
      %p423 = pneg %p134
      %p424 = pneg %p131
      %p425 = pneg %p155
      %p426 = pneg %p152
      %p427 = pneg %p176
      %p428 = pneg %p173
      %p429 = pneg %p197
      %p430 = pneg %p194
      %p431 = pneg %p218
      %p432 = pneg %p215
      %p433 = pneg %p239
      %p434 = pneg %p236
      %p435 = pneg %p260
      %p436 = pneg %p257
      %p437 = pneg %p281
      %p438 = pneg %p278
      %p439 = pneg %p302
      %p440 = pneg %p299
      %p441 = pneg %p328
      %p442 = pneg %p325
      %s443 = smul.u32 16, %s24
      %p444 = scmp.lt.s32.totalorder %s443, 31
      %s445 = scalar_select %p444, %s443, 31
      %s446 = smul.addr %s445, 8
      %s447 = scalar_lea.vmem %s13, %s446
      %s448 = smul.u32 16, %s24
      %p449 = scmp.lt.s32.totalorder %s448, 31
      %s450 = scalar_select %p449, %s448, 31
      %s451 = smul.addr %s450, 4
      %s452 = scalar_lea.vmem %s0, %s451
      %s453 = smul.u32 16, %s24
      %s454 = smul.u32 16, %s24
      %p455 = scmp.lt.s32.totalorder %s454, 31
      %s456 = scalar_select %p455, %s454, 31
      %s457 = smul.addr %s456, 4
      %s458 = scalar_lea.vmem %s1, %s457
      %s459 = smul.u32 16, %s24
      %s460 = smul.u32 16, %s24
      %p461 = scmp.lt.s32.totalorder %s460, 31
      %s462 = scalar_select %p461, %s460, 31
      %s463 = smul.addr %s462, 8
      %s464 = scalar_lea.vmem %s13, %s463
      %s465 = smul.u32 16, %s24
      %v467 = vld [vmem:[%s2] sm:$0xff]
      %v468 = vld [vmem:[%s2 + $0x8] sm:$0xff]
      %v469 = vld [vmem:[%s2 + $0x10] sm:$0xff]
      %v470 = vld [vmem:[%s2 + $0x18] sm:$0xff]
      %v471 = vld [vmem:[%s2 + $0x20] sm:$0xff]
      %v472 = vld [vmem:[%s2 + $0x28] sm:$0xff]
      %v473 = vld [vmem:[%s2 + $0x30] sm:$0xff]
      %v474 = vld [vmem:[%s2 + $0x38] sm:$0xff]
      %v475 = vld [vmem:[%s2 + $0x40] sm:$0xff]
      %v476 = vld [vmem:[%s2 + $0x48] sm:$0xff]
      %v477 = vld [vmem:[%s2 + $0x50] sm:$0xff]
      %v478 = vld [vmem:[%s2 + $0x58] sm:$0xff]
      %v479 = vld [vmem:[%s2 + $0x60] sm:$0xff]
      %v480 = vld [vmem:[%s2 + $0x68] sm:$0xff]
      %v481 = vld [vmem:[%s2 + $0x70] sm:$0xff]
      %v482 = vld [vmem:[%s2 + $0x78] sm:$0xff]
      %v483 = vld [vmem:[%s452] sm:$0xf]
      %v484 = vld [vmem:[%s452 + $0x4] sm:$0xf]
      %v485 = vld [vmem:[%s452 + $0x8] sm:$0xf]
      %v486 = vld [vmem:[%s452 + $0xc] sm:$0xf]
      %v487 = vld [vmem:[%s452 + $0x10] sm:$0xf]
      %v488 = vld [vmem:[%s452 + $0x14] sm:$0xf]
      %v489 = vld [vmem:[%s452 + $0x18] sm:$0xf]
      %v490 = vld [vmem:[%s452 + $0x1c] sm:$0xf]
      %v491 = vld [vmem:[%s452 + $0x20] sm:$0xf]
      %v492 = vld [vmem:[%s452 + $0x24] sm:$0xf]
      %v493 = vld [vmem:[%s452 + $0x28] sm:$0xf]
      %v494 = vld [vmem:[%s452 + $0x2c] sm:$0xf]
      %v495 = vld [vmem:[%s452 + $0x30] sm:$0xf]
      %v496 = vld [vmem:[%s452 + $0x34] sm:$0xf]
      %v497 = vld [vmem:[%s452 + $0x38] sm:$0xf]
      %v498 = vld [vmem:[%s452 + $0x3c] sm:$0xf]
      %v499 = vld [vmem:[%s3] sm:$0xff]
      %v500 = vld [vmem:[%s3 + $0x8] sm:$0xff]
      %v501 = vld [vmem:[%s3 + $0x10] sm:$0xff]
      %v502 = vld [vmem:[%s3 + $0x18] sm:$0xff]
      %v519 = vunpack.c.l.b16 %v483
      %v520 = vunpack.c.l.b16 %v484
      %v521 = vunpack.c.l.b16 %v485
      %v522 = vunpack.c.l.b16 %v486
      %v523 = vunpack.c.l.b16 %v487
      %v524 = vunpack.c.l.b16 %v488
      %v525 = vunpack.c.l.b16 %v489
      %v526 = vunpack.c.l.b16 %v490
      %v527 = vunpack.c.l.b16 %v491
      %v528 = vunpack.c.l.b16 %v492
      %v529 = vunpack.c.l.b16 %v493
      %v530 = vunpack.c.l.b16 %v494
      %v531 = vunpack.c.l.b16 %v495
      %v532 = vunpack.c.l.b16 %v496
      %v533 = vunpack.c.l.b16 %v497
      %v534 = vunpack.c.l.b16 %v498
      %v535 = vpack.c.b16 %v520, %v519
      %v536 = vpack.c.b16 %v522, %v521
      %v537 = vpack.c.b16 %v524, %v523
      %v538 = vpack.c.b16 %v526, %v525
      %v539 = vpack.c.b16 %v528, %v527
      %v540 = vpack.c.b16 %v530, %v529
      %v541 = vpack.c.b16 %v532, %v531
      %v542 = vpack.c.b16 %v534, %v533
      %v547 = vunpack.c.l.b16 %v499
      %v548 = vunpack.c.h.b16 %v499
      %v549 = vunpack.c.l.b16 %v500
      %v550 = vunpack.c.h.b16 %v500
      %v551 = vunpack.c.l.b16 %v501
      %v552 = vunpack.c.h.b16 %v501
      %v553 = vunpack.c.l.b16 %v502
      %v554 = vunpack.c.h.b16 %v502
      %v555 = vpack.c.b16 %v549, %v547
      %v556 = vpack.c.b16 %v550, %v548
      %v557 = vpack.c.b16 %v553, %v551
      %v558 = vpack.c.b16 %v554, %v552
      %vm563 = vcmask 261120
      %v565 = vsel %vm563, %v535, 0
      %v568 = vsel %vm563, %v536, 0
      %v571 = vsel %vm563, %v537, 0
      %v574 = vsel %vm563, %v538, 0
      %v577 = vsel %vm563, %v539, 0
      %v580 = vsel %vm563, %v540, 0
      %v583 = vsel %vm563, %v541, 0
      %v586 = vsel %vm563, %v542, 0
      %588 = vmatpush.bf16.msra.mxu0 0
      %589 = vmatpush.bf16.msra.mxu0 0
      %590 = vmatpush.bf16.msra.mxu0 0
      %591 = vmatpush.bf16.msra.mxu0 0
      %592 = vmatpush.bf16.msra.mxu0 0
      %593 = vmatpush.bf16.msra.mxu0 0
      %594 = vmatpush.bf16.msra.mxu0 %v557
      %595 = vmatpush.bf16.msra.mxu0 %v555
      %596 = vmatmul.bf16.gmra.mxu0 %v565
      %v597 = vpop.f32.mrf.mxu0
      %v598 = vadd.f32 0.0, %v597
      %v599 = vpop.f32.mrf.mxu0
      %v600 = vadd.f32 0.0, %v599
      %601 = vmatmul.bf16.gmra.mxu0 %v568
      %v602 = vpop.f32.mrf.mxu0
      %v603 = vadd.f32 0.0, %v602
      %v604 = vpop.f32.mrf.mxu0
      %v605 = vadd.f32 0.0, %v604
      %606 = vmatmul.bf16.gmra.mxu0 %v571
      %v607 = vpop.f32.mrf.mxu0
      %v608 = vadd.f32 0.0, %v607
      %v609 = vpop.f32.mrf.mxu0
      %v610 = vadd.f32 0.0, %v609
      %611 = vmatmul.bf16.gmra.mxu0 %v574
      %v612 = vpop.f32.mrf.mxu0
      %v613 = vadd.f32 0.0, %v612
      %v614 = vpop.f32.mrf.mxu0
      %v615 = vadd.f32 0.0, %v614
      %616 = vmatmul.bf16.gmra.mxu0 %v577
      %v617 = vpop.f32.mrf.mxu0
      %v618 = vadd.f32 0.0, %v617
      %v619 = vpop.f32.mrf.mxu0
      %v620 = vadd.f32 0.0, %v619
      %621 = vmatmul.bf16.gmra.mxu0 %v580
      %v622 = vpop.f32.mrf.mxu0
      %v623 = vadd.f32 0.0, %v622
      %v624 = vpop.f32.mrf.mxu0
      %v625 = vadd.f32 0.0, %v624
      %626 = vmatmul.bf16.gmra.mxu0 %v583
      %v627 = vpop.f32.mrf.mxu0
      %v628 = vadd.f32 0.0, %v627
      %v629 = vpop.f32.mrf.mxu0
      %v630 = vadd.f32 0.0, %v629
      %631 = vmatmul.bf16.gmra.mxu0 %v586
      %v632 = vpop.f32.mrf.mxu0
      %v633 = vadd.f32 0.0, %v632
      %v634 = vpop.f32.mrf.mxu0
      %v635 = vadd.f32 0.0, %v634
      %636 = vdwg.mxu0
      %637 = vmatpush.bf16.msra.mxu0 0
      %638 = vmatpush.bf16.msra.mxu0 0
      %639 = vmatpush.bf16.msra.mxu0 0
      %640 = vmatpush.bf16.msra.mxu0 0
      %641 = vmatpush.bf16.msra.mxu0 0
      %642 = vmatpush.bf16.msra.mxu0 0
      %643 = vmatpush.bf16.msra.mxu0 %v558
      %644 = vmatpush.bf16.msra.mxu0 %v556
      %645 = vmatmul.bf16.gmra.mxu0 %v565
      %v646 = vpop.f32.mrf.mxu0
      %v647 = vadd.f32 0.0, %v646
      %v648 = vpop.f32.mrf.mxu0
      %v649 = vadd.f32 0.0, %v648
      %650 = vmatmul.bf16.gmra.mxu0 %v568
      %v651 = vpop.f32.mrf.mxu0
      %v652 = vadd.f32 0.0, %v651
      %v653 = vpop.f32.mrf.mxu0
      %v654 = vadd.f32 0.0, %v653
      %655 = vmatmul.bf16.gmra.mxu0 %v571
      %v656 = vpop.f32.mrf.mxu0
      %v657 = vadd.f32 0.0, %v656
      %v658 = vpop.f32.mrf.mxu0
      %v659 = vadd.f32 0.0, %v658
      %660 = vmatmul.bf16.gmra.mxu0 %v574
      %v661 = vpop.f32.mrf.mxu0
      %v662 = vadd.f32 0.0, %v661
      %v663 = vpop.f32.mrf.mxu0
      %v664 = vadd.f32 0.0, %v663
      %665 = vmatmul.bf16.gmra.mxu0 %v577
      %v666 = vpop.f32.mrf.mxu0
      %v667 = vadd.f32 0.0, %v666
      %v668 = vpop.f32.mrf.mxu0
      %v669 = vadd.f32 0.0, %v668
      %670 = vmatmul.bf16.gmra.mxu0 %v580
      %v671 = vpop.f32.mrf.mxu0
      %v672 = vadd.f32 0.0, %v671
      %v673 = vpop.f32.mrf.mxu0
      %v674 = vadd.f32 0.0, %v673
      %675 = vmatmul.bf16.gmra.mxu0 %v583
      %v676 = vpop.f32.mrf.mxu0
      %v677 = vadd.f32 0.0, %v676
      %v678 = vpop.f32.mrf.mxu0
      %v679 = vadd.f32 0.0, %v678
      %680 = vmatmul.bf16.gmra.mxu0 %v586
      %v681 = vpop.f32.mrf.mxu0
      %v682 = vadd.f32 0.0, %v681
      %v683 = vpop.f32.mrf.mxu0
      %v684 = vadd.f32 0.0, %v683
      %685 = vdwg.mxu0
      %v686 = vrot.slane %v598, 7
      %v687 = vrot.slane %v600, 7
      %v688 = vrot.slane %v603, 7
      %v689 = vrot.slane %v605, 7
      %v690 = vrot.slane %v608, 7
      %v691 = vrot.slane %v610, 7
      %v692 = vrot.slane %v613, 7
      %v693 = vrot.slane %v615, 7
      %v694 = vrot.slane %v618, 7
      %v695 = vrot.slane %v620, 7
      %v696 = vrot.slane %v623, 7
      %v697 = vrot.slane %v625, 7
      %v698 = vrot.slane %v628, 7
      %v699 = vrot.slane %v630, 7
      %v700 = vrot.slane %v633, 7
      %v701 = vrot.slane %v635, 7
      %v702 = vlaneseq
      %v703 = vshrl.u32 %v702, 7
      %vm704 = vcmp.lt.s32.totalorder %v703, 1
      %v705 = vsel %vm704, %v700, %v701
      %v706 = vsel %vm704, %v699, %v700
      %v707 = vsel %vm704, %v698, %v699
      %v708 = vsel %vm704, %v697, %v698
      %v709 = vsel %vm704, %v696, %v697
      %v710 = vsel %vm704, %v695, %v696
      %v711 = vsel %vm704, %v694, %v695
      %v712 = vsel %vm704, %v693, %v694
      %v713 = vsel %vm704, %v692, %v693
      %v714 = vsel %vm704, %v691, %v692
      %v715 = vsel %vm704, %v690, %v691
      %v716 = vsel %vm704, %v689, %v690
      %v717 = vsel %vm704, %v688, %v689
      %v718 = vsel %vm704, %v687, %v688
      %v719 = vsel %vm704, %v686, %v687
      %v720 = vsel %vm704, %v701, %v686
      %722 = vset.pattern.permute.xlu0 0
      %723 = vperm.xlu0 %722, %v467
      %v724 = vpop.permute.xlu0 %723
      %727 = vset.pattern.permute.xlu0 0
      %728 = vperm.xlu0 %727, %v468
      %v729 = vpop.permute.xlu0 %728
      %732 = vset.pattern.permute.xlu0 0
      %733 = vperm.xlu0 %732, %v469
      %v734 = vpop.permute.xlu0 %733
      %737 = vset.pattern.permute.xlu0 0
      %738 = vperm.xlu0 %737, %v470
      %v739 = vpop.permute.xlu0 %738
      %742 = vset.pattern.permute.xlu0 0
      %743 = vperm.xlu0 %742, %v471
      %v744 = vpop.permute.xlu0 %743
      %747 = vset.pattern.permute.xlu0 0
      %748 = vperm.xlu0 %747, %v472
      %v749 = vpop.permute.xlu0 %748
      %752 = vset.pattern.permute.xlu0 0
      %753 = vperm.xlu0 %752, %v473
      %v754 = vpop.permute.xlu0 %753
      %757 = vset.pattern.permute.xlu0 0
      %758 = vperm.xlu0 %757, %v474
      %v759 = vpop.permute.xlu0 %758
      %762 = vset.pattern.permute.xlu0 0
      %763 = vperm.xlu0 %762, %v475
      %v764 = vpop.permute.xlu0 %763
      %767 = vset.pattern.permute.xlu0 0
      %768 = vperm.xlu0 %767, %v476
      %v769 = vpop.permute.xlu0 %768
      %772 = vset.pattern.permute.xlu0 0
      %773 = vperm.xlu0 %772, %v477
      %v774 = vpop.permute.xlu0 %773
      %777 = vset.pattern.permute.xlu0 0
      %778 = vperm.xlu0 %777, %v478
      %v779 = vpop.permute.xlu0 %778
      %782 = vset.pattern.permute.xlu0 0
      %783 = vperm.xlu0 %782, %v479
      %v784 = vpop.permute.xlu0 %783
      %787 = vset.pattern.permute.xlu0 0
      %788 = vperm.xlu0 %787, %v480
      %v789 = vpop.permute.xlu0 %788
      %792 = vset.pattern.permute.xlu0 0
      %793 = vperm.xlu0 %792, %v481
      %v794 = vpop.permute.xlu0 %793
      %797 = vset.pattern.permute.xlu0 0
      %798 = vperm.xlu0 %797, %v482
      %v799 = vpop.permute.xlu0 %798
      %v801 = vmul.f32 %v720, %v724
      %v802 = vmul.f32 %v719, %v729
      %v803 = vmul.f32 %v718, %v734
      %v804 = vmul.f32 %v717, %v739
      %v805 = vmul.f32 %v716, %v744
      %v806 = vmul.f32 %v715, %v749
      %v807 = vmul.f32 %v714, %v754
      %v808 = vmul.f32 %v713, %v759
      %v809 = vmul.f32 %v712, %v764
      %v810 = vmul.f32 %v711, %v769
      %v811 = vmul.f32 %v710, %v774
      %v812 = vmul.f32 %v709, %v779
      %v813 = vmul.f32 %v708, %v784
      %v814 = vmul.f32 %v707, %v789
      %v815 = vmul.f32 %v706, %v794
      %v816 = vmul.f32 %v705, %v799
      %v817 = vrot.slane %v647, 1
      %v818 = vrot.slane %v649, 1
      %v819 = vrot.slane %v652, 1
      %v820 = vrot.slane %v654, 1
      %v821 = vrot.slane %v657, 1
      %v822 = vrot.slane %v659, 1
      %v823 = vrot.slane %v662, 1
      %v824 = vrot.slane %v664, 1
      %v825 = vrot.slane %v667, 1
      %v826 = vrot.slane %v669, 1
      %v827 = vrot.slane %v672, 1
      %v828 = vrot.slane %v674, 1
      %v829 = vrot.slane %v677, 1
      %v830 = vrot.slane %v679, 1
      %v831 = vrot.slane %v682, 1
      %v832 = vrot.slane %v684, 1
      %vm833 = vcmp.lt.s32.totalorder %v703, 7
      %v834 = vsel %vm833, %v831, %v832
      %v835 = vsel %vm833, %v830, %v831
      %v836 = vsel %vm833, %v829, %v830
      %v837 = vsel %vm833, %v828, %v829
      %v838 = vsel %vm833, %v827, %v828
      %v839 = vsel %vm833, %v826, %v827
      %v840 = vsel %vm833, %v825, %v826
      %v841 = vsel %vm833, %v824, %v825
      %v842 = vsel %vm833, %v823, %v824
      %v843 = vsel %vm833, %v822, %v823
      %v844 = vsel %vm833, %v821, %v822
      %v845 = vsel %vm833, %v820, %v821
      %v846 = vsel %vm833, %v819, %v820
      %v847 = vsel %vm833, %v818, %v819
      %v848 = vsel %vm833, %v817, %v818
      %v849 = vsel %vm833, %v832, %v817
      %850 = vset.pattern.permute.xlu0 1
      %851 = vperm.xlu0 %850, %v467
      %v852 = vpop.permute.xlu0 %851
      %854 = vset.pattern.permute.xlu0 1
      %855 = vperm.xlu0 %854, %v468
      %v856 = vpop.permute.xlu0 %855
      %858 = vset.pattern.permute.xlu0 1
      %859 = vperm.xlu0 %858, %v469
      %v860 = vpop.permute.xlu0 %859
      %862 = vset.pattern.permute.xlu0 1
      %863 = vperm.xlu0 %862, %v470
      %v864 = vpop.permute.xlu0 %863
      %866 = vset.pattern.permute.xlu0 1
      %867 = vperm.xlu0 %866, %v471
      %v868 = vpop.permute.xlu0 %867
      %870 = vset.pattern.permute.xlu0 1
      %871 = vperm.xlu0 %870, %v472
      %v872 = vpop.permute.xlu0 %871
      %874 = vset.pattern.permute.xlu0 1
      %875 = vperm.xlu0 %874, %v473
      %v876 = vpop.permute.xlu0 %875
      %878 = vset.pattern.permute.xlu0 1
      %879 = vperm.xlu0 %878, %v474
      %v880 = vpop.permute.xlu0 %879
      %882 = vset.pattern.permute.xlu0 1
      %883 = vperm.xlu0 %882, %v475
      %v884 = vpop.permute.xlu0 %883
      %886 = vset.pattern.permute.xlu0 1
      %887 = vperm.xlu0 %886, %v476
      %v888 = vpop.permute.xlu0 %887
      %890 = vset.pattern.permute.xlu0 1
      %891 = vperm.xlu0 %890, %v477
      %v892 = vpop.permute.xlu0 %891
      %894 = vset.pattern.permute.xlu0 1
      %895 = vperm.xlu0 %894, %v478
      %v896 = vpop.permute.xlu0 %895
      %898 = vset.pattern.permute.xlu0 1
      %899 = vperm.xlu0 %898, %v479
      %v900 = vpop.permute.xlu0 %899
      %902 = vset.pattern.permute.xlu0 1
      %903 = vperm.xlu0 %902, %v480
      %v904 = vpop.permute.xlu0 %903
      %906 = vset.pattern.permute.xlu0 1
      %907 = vperm.xlu0 %906, %v481
      %v908 = vpop.permute.xlu0 %907
      %910 = vset.pattern.permute.xlu0 1
      %911 = vperm.xlu0 %910, %v482
      %v912 = vpop.permute.xlu0 %911
      %v914 = vmul.f32 %v848, %v852
      %v915 = vmul.f32 %v847, %v856
      %v916 = vmul.f32 %v846, %v860
      %v917 = vmul.f32 %v845, %v864
      %v918 = vmul.f32 %v844, %v868
      %v919 = vmul.f32 %v843, %v872
      %v920 = vmul.f32 %v842, %v876
      %v921 = vmul.f32 %v841, %v880
      %v922 = vmul.f32 %v840, %v884
      %v923 = vmul.f32 %v839, %v888
      %v924 = vmul.f32 %v838, %v892
      %v925 = vmul.f32 %v837, %v896
      %v926 = vmul.f32 %v836, %v900
      %v927 = vmul.f32 %v835, %v904
      %v928 = vmul.f32 %v834, %v908
      %v929 = vmul.f32 %v849, %v912
      %946 = vrot.lane.b32.xlu0 %v801, 64
      %v947 = vpop.permute.xlu0 %946
      %948 = vrot.lane.b32.xlu0 %v802, 64
      %v949 = vpop.permute.xlu0 %948
      %950 = vrot.lane.b32.xlu0 %v803, 64
      %v951 = vpop.permute.xlu0 %950
      %952 = vrot.lane.b32.xlu0 %v804, 64
      %v953 = vpop.permute.xlu0 %952
      %954 = vrot.lane.b32.xlu0 %v805, 64
      %v955 = vpop.permute.xlu0 %954
      %956 = vrot.lane.b32.xlu0 %v806, 64
      %v957 = vpop.permute.xlu0 %956
      %958 = vrot.lane.b32.xlu0 %v807, 64
      %v959 = vpop.permute.xlu0 %958
      %960 = vrot.lane.b32.xlu0 %v808, 64
      %v961 = vpop.permute.xlu0 %960
      %962 = vrot.lane.b32.xlu0 %v809, 64
      %v963 = vpop.permute.xlu0 %962
      %964 = vrot.lane.b32.xlu0 %v810, 64
      %v965 = vpop.permute.xlu0 %964
      %966 = vrot.lane.b32.xlu0 %v811, 64
      %v967 = vpop.permute.xlu0 %966
      %968 = vrot.lane.b32.xlu0 %v812, 64
      %v969 = vpop.permute.xlu0 %968
      %970 = vrot.lane.b32.xlu0 %v813, 64
      %v971 = vpop.permute.xlu0 %970
      %972 = vrot.lane.b32.xlu0 %v814, 64
      %v973 = vpop.permute.xlu0 %972
      %974 = vrot.lane.b32.xlu0 %v815, 64
      %v975 = vpop.permute.xlu0 %974
      %976 = vrot.lane.b32.xlu0 %v816, 64
      %v977 = vpop.permute.xlu0 %976
      %v994 = vadd.f32 %v598, %v947
      %v995 = vadd.f32 %v600, %v949
      %v996 = vadd.f32 %v603, %v951
      %v997 = vadd.f32 %v605, %v953
      %v998 = vadd.f32 %v608, %v955
      %v999 = vadd.f32 %v610, %v957
      %v1000 = vadd.f32 %v613, %v959
      %v1001 = vadd.f32 %v615, %v961
      %v1002 = vadd.f32 %v618, %v963
      %v1003 = vadd.f32 %v620, %v965
      %v1004 = vadd.f32 %v623, %v967
      %v1005 = vadd.f32 %v625, %v969
      %v1006 = vadd.f32 %v628, %v971
      %v1007 = vadd.f32 %v630, %v973
      %v1008 = vadd.f32 %v633, %v975
      %v1009 = vadd.f32 %v635, %v977
      %1026 = vrot.lane.b32.xlu0 %v914, 64
      %v1027 = vpop.permute.xlu0 %1026
      %1028 = vrot.lane.b32.xlu0 %v915, 64
      %v1029 = vpop.permute.xlu0 %1028
      %1030 = vrot.lane.b32.xlu0 %v916, 64
      %v1031 = vpop.permute.xlu0 %1030
      %1032 = vrot.lane.b32.xlu0 %v917, 64
      %v1033 = vpop.permute.xlu0 %1032
      %1034 = vrot.lane.b32.xlu0 %v918, 64
      %v1035 = vpop.permute.xlu0 %1034
      %1036 = vrot.lane.b32.xlu0 %v919, 64
      %v1037 = vpop.permute.xlu0 %1036
      %1038 = vrot.lane.b32.xlu0 %v920, 64
      %v1039 = vpop.permute.xlu0 %1038
      %1040 = vrot.lane.b32.xlu0 %v921, 64
      %v1041 = vpop.permute.xlu0 %1040
      %1042 = vrot.lane.b32.xlu0 %v922, 64
      %v1043 = vpop.permute.xlu0 %1042
      %1044 = vrot.lane.b32.xlu0 %v923, 64
      %v1045 = vpop.permute.xlu0 %1044
      %1046 = vrot.lane.b32.xlu0 %v924, 64
      %v1047 = vpop.permute.xlu0 %1046
      %1048 = vrot.lane.b32.xlu0 %v925, 64
      %v1049 = vpop.permute.xlu0 %1048
      %1050 = vrot.lane.b32.xlu0 %v926, 64
      %v1051 = vpop.permute.xlu0 %1050
      %1052 = vrot.lane.b32.xlu0 %v927, 64
      %v1053 = vpop.permute.xlu0 %1052
      %1054 = vrot.lane.b32.xlu0 %v928, 64
      %v1055 = vpop.permute.xlu0 %1054
      %1056 = vrot.lane.b32.xlu0 %v929, 64
      %v1057 = vpop.permute.xlu0 %1056
      %v1074 = vadd.f32 %v994, %v1027
      %v1075 = vadd.f32 %v995, %v1029
      %v1076 = vadd.f32 %v996, %v1031
      %v1077 = vadd.f32 %v997, %v1033
      %v1078 = vadd.f32 %v998, %v1035
      %v1079 = vadd.f32 %v999, %v1037
      %v1080 = vadd.f32 %v1000, %v1039
      %v1081 = vadd.f32 %v1001, %v1041
      %v1082 = vadd.f32 %v1002, %v1043
      %v1083 = vadd.f32 %v1003, %v1045
      %v1084 = vadd.f32 %v1004, %v1047
      %v1085 = vadd.f32 %v1005, %v1049
      %v1086 = vadd.f32 %v1006, %v1051
      %v1087 = vadd.f32 %v1007, %v1053
      %v1088 = vadd.f32 %v1008, %v1055
      %v1089 = vadd.f32 %v1009, %v1057
      %v1090 = vld [vmem:[%s4] sm:$0x1]
      %v1091 = vperm.slane %v1090, 0
      %1093 = vrot.lane.b32.xlu0 %v1091, 64
      %v1094 = vpop.permute.xlu0 %1093
      %v1096 = vadd.f32 %v1074, %v1094
      %v1097 = vadd.f32 %v1075, %v1094
      %v1098 = vadd.f32 %v1076, %v1094
      %v1099 = vadd.f32 %v1077, %v1094
      %v1100 = vadd.f32 %v1078, %v1094
      %v1101 = vadd.f32 %v1079, %v1094
      %v1102 = vadd.f32 %v1080, %v1094
      %v1103 = vadd.f32 %v1081, %v1094
      %v1104 = vadd.f32 %v1082, %v1094
      %v1105 = vadd.f32 %v1083, %v1094
      %v1106 = vadd.f32 %v1084, %v1094
      %v1107 = vadd.f32 %v1085, %v1094
      %v1108 = vadd.f32 %v1086, %v1094
      %v1109 = vadd.f32 %v1087, %v1094
      %v1110 = vadd.f32 %v1088, %v1094
      %v1111 = vadd.f32 %v1089, %v1094
      %vm1112 = vcmp.gt.f32.partialorder %v1096, 0.0
      %vm1113 = vcmp.gt.f32.partialorder %v1097, 0.0
      %vm1114 = vcmp.gt.f32.partialorder %v1098, 0.0
      %vm1115 = vcmp.gt.f32.partialorder %v1099, 0.0
      %vm1116 = vcmp.gt.f32.partialorder %v1100, 0.0
      %vm1117 = vcmp.gt.f32.partialorder %v1101, 0.0
      %vm1118 = vcmp.gt.f32.partialorder %v1102, 0.0
      %vm1119 = vcmp.gt.f32.partialorder %v1103, 0.0
      %vm1120 = vcmp.gt.f32.partialorder %v1104, 0.0
      %vm1121 = vcmp.gt.f32.partialorder %v1105, 0.0
      %vm1122 = vcmp.gt.f32.partialorder %v1106, 0.0
      %vm1123 = vcmp.gt.f32.partialorder %v1107, 0.0
      %vm1124 = vcmp.gt.f32.partialorder %v1108, 0.0
      %vm1125 = vcmp.gt.f32.partialorder %v1109, 0.0
      %vm1126 = vcmp.gt.f32.partialorder %v1110, 0.0
      %vm1127 = vcmp.gt.f32.partialorder %v1111, 0.0
      %v1128 = vld [vmem:[%s4 + $0x1] sm:$0x1]
      %v1129 = vperm.slane %v1128, 0
      %1146 = vrot.lane.b32.xlu0 %v1096, 64
      %v1147 = vpop.permute.xlu0 %1146
      %1148 = vrot.lane.b32.xlu0 %v1097, 64
      %v1149 = vpop.permute.xlu0 %1148
      %1150 = vrot.lane.b32.xlu0 %v1098, 64
      %v1151 = vpop.permute.xlu0 %1150
      %1152 = vrot.lane.b32.xlu0 %v1099, 64
      %v1153 = vpop.permute.xlu0 %1152
      %1154 = vrot.lane.b32.xlu0 %v1100, 64
      %v1155 = vpop.permute.xlu0 %1154
      %1156 = vrot.lane.b32.xlu0 %v1101, 64
      %v1157 = vpop.permute.xlu0 %1156
      %1158 = vrot.lane.b32.xlu0 %v1102, 64
      %v1159 = vpop.permute.xlu0 %1158
      %1160 = vrot.lane.b32.xlu0 %v1103, 64
      %v1161 = vpop.permute.xlu0 %1160
      %1162 = vrot.lane.b32.xlu0 %v1104, 64
      %v1163 = vpop.permute.xlu0 %1162
      %1164 = vrot.lane.b32.xlu0 %v1105, 64
      %v1165 = vpop.permute.xlu0 %1164
      %1166 = vrot.lane.b32.xlu0 %v1106, 64
      %v1167 = vpop.permute.xlu0 %1166
      %1168 = vrot.lane.b32.xlu0 %v1107, 64
      %v1169 = vpop.permute.xlu0 %1168
      %1170 = vrot.lane.b32.xlu0 %v1108, 64
      %v1171 = vpop.permute.xlu0 %1170
      %1172 = vrot.lane.b32.xlu0 %v1109, 64
      %v1173 = vpop.permute.xlu0 %1172
      %1174 = vrot.lane.b32.xlu0 %v1110, 64
      %v1175 = vpop.permute.xlu0 %1174
      %1176 = vrot.lane.b32.xlu0 %v1111, 64
      %v1177 = vpop.permute.xlu0 %1176
      %v1194 = vmul.f32 %v1129, %v1147
      %v1195 = vmul.f32 %v1129, %v1149
      %v1196 = vmul.f32 %v1129, %v1151
      %v1197 = vmul.f32 %v1129, %v1153
      %v1198 = vmul.f32 %v1129, %v1155
      %v1199 = vmul.f32 %v1129, %v1157
      %v1200 = vmul.f32 %v1129, %v1159
      %v1201 = vmul.f32 %v1129, %v1161
      %v1202 = vmul.f32 %v1129, %v1163
      %v1203 = vmul.f32 %v1129, %v1165
      %v1204 = vmul.f32 %v1129, %v1167
      %v1205 = vmul.f32 %v1129, %v1169
      %v1206 = vmul.f32 %v1129, %v1171
      %v1207 = vmul.f32 %v1129, %v1173
      %v1208 = vmul.f32 %v1129, %v1175
      %v1209 = vmul.f32 %v1129, %v1177
      %1226 = vrot.lane.b32.xlu0 %v1194, 64
      %v1227 = vpop.permute.xlu0 %1226
      %1228 = vrot.lane.b32.xlu0 %v1195, 64
      %v1229 = vpop.permute.xlu0 %1228
      %1230 = vrot.lane.b32.xlu0 %v1196, 64
      %v1231 = vpop.permute.xlu0 %1230
      %1232 = vrot.lane.b32.xlu0 %v1197, 64
      %v1233 = vpop.permute.xlu0 %1232
      %1234 = vrot.lane.b32.xlu0 %v1198, 64
      %v1235 = vpop.permute.xlu0 %1234
      %1236 = vrot.lane.b32.xlu0 %v1199, 64
      %v1237 = vpop.permute.xlu0 %1236
      %1238 = vrot.lane.b32.xlu0 %v1200, 64
      %v1239 = vpop.permute.xlu0 %1238
      %1240 = vrot.lane.b32.xlu0 %v1201, 64
      %v1241 = vpop.permute.xlu0 %1240
      %1242 = vrot.lane.b32.xlu0 %v1202, 64
      %v1243 = vpop.permute.xlu0 %1242
      %1244 = vrot.lane.b32.xlu0 %v1203, 64
      %v1245 = vpop.permute.xlu0 %1244
      %1246 = vrot.lane.b32.xlu0 %v1204, 64
      %v1247 = vpop.permute.xlu0 %1246
      %1248 = vrot.lane.b32.xlu0 %v1205, 64
      %v1249 = vpop.permute.xlu0 %1248
      %1250 = vrot.lane.b32.xlu0 %v1206, 64
      %v1251 = vpop.permute.xlu0 %1250
      %1252 = vrot.lane.b32.xlu0 %v1207, 64
      %v1253 = vpop.permute.xlu0 %1252
      %1254 = vrot.lane.b32.xlu0 %v1208, 64
      %v1255 = vpop.permute.xlu0 %1254
      %1256 = vrot.lane.b32.xlu0 %v1209, 64
      %v1257 = vpop.permute.xlu0 %1256
      %v1274 = vsel %vm1112, %v1096, %v1227
      %v1275 = vsel %vm1113, %v1097, %v1229
      %v1276 = vsel %vm1114, %v1098, %v1231
      %v1277 = vsel %vm1115, %v1099, %v1233
      %v1278 = vsel %vm1116, %v1100, %v1235
      %v1279 = vsel %vm1117, %v1101, %v1237
      %v1280 = vsel %vm1118, %v1102, %v1239
      %v1281 = vsel %vm1119, %v1103, %v1241
      %v1282 = vsel %vm1120, %v1104, %v1243
      %v1283 = vsel %vm1121, %v1105, %v1245
      %v1284 = vsel %vm1122, %v1106, %v1247
      %v1285 = vsel %vm1123, %v1107, %v1249
      %v1286 = vsel %vm1124, %v1108, %v1251
      %v1287 = vsel %vm1125, %v1109, %v1253
      %v1288 = vsel %vm1126, %v1110, %v1255
      %v1289 = vsel %vm1127, %v1111, %v1257
      %v1290 = vpack.c.bf16 %v1274, %v1274
      %v1291 = vpack.c.bf16 %v1275, %v1275
      %v1292 = vpack.c.bf16 %v1276, %v1276
      %v1293 = vpack.c.bf16 %v1277, %v1277
      %v1294 = vpack.c.bf16 %v1278, %v1278
      %v1295 = vpack.c.bf16 %v1279, %v1279
      %v1296 = vpack.c.bf16 %v1280, %v1280
      %v1297 = vpack.c.bf16 %v1281, %v1281
      %v1298 = vpack.c.bf16 %v1282, %v1282
      %v1299 = vpack.c.bf16 %v1283, %v1283
      %v1300 = vpack.c.bf16 %v1284, %v1284
      %v1301 = vpack.c.bf16 %v1285, %v1285
      %v1302 = vpack.c.bf16 %v1286, %v1286
      %v1303 = vpack.c.bf16 %v1287, %v1287
      %v1304 = vpack.c.bf16 %v1288, %v1288
      %v1305 = vpack.c.bf16 %v1289, %v1289
      %v1306 = vld [vmem:[%s458] sm:$0xf]
      %v1307 = vld [vmem:[%s458 + $0x4] sm:$0xf]
      %v1308 = vld [vmem:[%s458 + $0x8] sm:$0xf]
      %v1309 = vld [vmem:[%s458 + $0xc] sm:$0xf]
      %v1310 = vld [vmem:[%s458 + $0x10] sm:$0xf]
      %v1311 = vld [vmem:[%s458 + $0x14] sm:$0xf]
      %v1312 = vld [vmem:[%s458 + $0x18] sm:$0xf]
      %v1313 = vld [vmem:[%s458 + $0x1c] sm:$0xf]
      %v1314 = vld [vmem:[%s458 + $0x20] sm:$0xf]
      %v1315 = vld [vmem:[%s458 + $0x24] sm:$0xf]
      %v1316 = vld [vmem:[%s458 + $0x28] sm:$0xf]
      %v1317 = vld [vmem:[%s458 + $0x2c] sm:$0xf]
      %v1318 = vld [vmem:[%s458 + $0x30] sm:$0xf]
      %v1319 = vld [vmem:[%s458 + $0x34] sm:$0xf]
      %v1320 = vld [vmem:[%s458 + $0x38] sm:$0xf]
      %v1321 = vld [vmem:[%s458 + $0x3c] sm:$0xf]
      %v1338 = vunpack.c.l.b16 %v1306
      %v1339 = vunpack.c.l.b16 %v1307
      %v1340 = vunpack.c.l.b16 %v1308
      %v1341 = vunpack.c.l.b16 %v1309
      %v1342 = vunpack.c.l.b16 %v1310
      %v1343 = vunpack.c.l.b16 %v1311
      %v1344 = vunpack.c.l.b16 %v1312
      %v1345 = vunpack.c.l.b16 %v1313
      %v1346 = vunpack.c.l.b16 %v1314
      %v1347 = vunpack.c.l.b16 %v1315
      %v1348 = vunpack.c.l.b16 %v1316
      %v1349 = vunpack.c.l.b16 %v1317
      %v1350 = vunpack.c.l.b16 %v1318
      %v1351 = vunpack.c.l.b16 %v1319
      %v1352 = vunpack.c.l.b16 %v1320
      %v1353 = vunpack.c.l.b16 %v1321
      %v1354 = vpack.c.b16 %v1339, %v1338
      %v1355 = vpack.c.b16 %v1341, %v1340
      %v1356 = vpack.c.b16 %v1343, %v1342
      %v1357 = vpack.c.b16 %v1345, %v1344
      %v1358 = vpack.c.b16 %v1347, %v1346
      %v1359 = vpack.c.b16 %v1349, %v1348
      %v1360 = vpack.c.b16 %v1351, %v1350
      %v1361 = vpack.c.b16 %v1353, %v1352
      %v1378 = vunpack.c.l.b16 %v1290
      %v1379 = vunpack.c.l.b16 %v1291
      %v1380 = vunpack.c.l.b16 %v1292
      %v1381 = vunpack.c.l.b16 %v1293
      %v1382 = vunpack.c.l.b16 %v1294
      %v1383 = vunpack.c.l.b16 %v1295
      %v1384 = vunpack.c.l.b16 %v1296
      %v1385 = vunpack.c.l.b16 %v1297
      %v1386 = vunpack.c.l.b16 %v1298
      %v1387 = vunpack.c.l.b16 %v1299
      %v1388 = vunpack.c.l.b16 %v1300
      %v1389 = vunpack.c.l.b16 %v1301
      %v1390 = vunpack.c.l.b16 %v1302
      %v1391 = vunpack.c.l.b16 %v1303
      %v1392 = vunpack.c.l.b16 %v1304
      %v1393 = vunpack.c.l.b16 %v1305
      %v1394 = vpack.c.b16 %v1379, %v1378
      %v1395 = vpack.c.b16 %v1381, %v1380
      %v1396 = vpack.c.b16 %v1383, %v1382
      %v1397 = vpack.c.b16 %v1385, %v1384
      %v1398 = vpack.c.b16 %v1387, %v1386
      %v1399 = vpack.c.b16 %v1389, %v1388
      %v1400 = vpack.c.b16 %v1391, %v1390
      %v1401 = vpack.c.b16 %v1393, %v1392
      %vm1402 = vcmask 523264
      %v1405 = vsel %vm1402, %v1354, %v1394
      %v1409 = vsel %vm1402, %v1355, %v1395
      %v1413 = vsel %vm1402, %v1356, %v1396
      %v1417 = vsel %vm1402, %v1357, %v1397
      %v1421 = vsel %vm1402, %v1358, %v1398
      %v1425 = vsel %vm1402, %v1359, %v1399
      %v1429 = vsel %vm1402, %v1360, %v1400
      %v1433 = vsel %vm1402, %v1361, %v1401
      %v1435 = vld [vmem:[%s5] sm:$0xff]
      %v1436 = vld [vmem:[%s5 + $0x8] sm:$0xf]
      %v1437 = vld [vmem:[%s5 + $0xc] sm:$0xff]
      %v1438 = vld [vmem:[%s5 + $0x14] sm:$0xf]
      %v1439 = vld [vmem:[%s5 + $0x18] sm:$0xff]
      %v1440 = vld [vmem:[%s5 + $0x20] sm:$0xf]
      %v1441 = vld [vmem:[%s5 + $0x24] sm:$0xff]
      %v1442 = vld [vmem:[%s5 + $0x2c] sm:$0xf]
      %v1443 = vld [vmem:[%s5 + $0x30] sm:$0xff]
      %v1444 = vld [vmem:[%s5 + $0x38] sm:$0xf]
      %v1445 = vld [vmem:[%s5 + $0x3c] sm:$0xff]
      %v1446 = vld [vmem:[%s5 + $0x44] sm:$0xf]
      %v1447 = vld [vmem:[%s5 + $0x48] sm:$0xff]
      %v1448 = vld [vmem:[%s5 + $0x50] sm:$0xf]
      %v1449 = vld [vmem:[%s5 + $0x54] sm:$0xff]
      %v1450 = vld [vmem:[%s5 + $0x5c] sm:$0xf]
      %v1451 = vld [vmem:[%s5 + $0x60] sm:$0xff]
      %v1452 = vld [vmem:[%s5 + $0x68] sm:$0xf]
      %v1453 = vld [vmem:[%s5 + $0x6c] sm:$0xff]
      %v1454 = vld [vmem:[%s5 + $0x74] sm:$0xf]
      %v1455 = vld [vmem:[%s5 + $0x78] sm:$0xff]
      %v1456 = vld [vmem:[%s5 + $0x80] sm:$0xf]
      %v1457 = vld [vmem:[%s5 + $0x84] sm:$0xff]
      %v1458 = vld [vmem:[%s5 + $0x8c] sm:$0xf]
      %v1459 = vld [vmem:[%s5 + $0x90] sm:$0xff]
      %v1460 = vld [vmem:[%s5 + $0x98] sm:$0xf]
      %v1461 = vld [vmem:[%s5 + $0x9c] sm:$0xff]
      %v1462 = vld [vmem:[%s5 + $0xa4] sm:$0xf]
      %v1463 = vld [vmem:[%s5 + $0xa8] sm:$0xff]
      %v1464 = vld [vmem:[%s5 + $0xb0] sm:$0xf]
      %v1465 = vld [vmem:[%s5 + $0xb4] sm:$0xff]
      %v1466 = vld [vmem:[%s5 + $0xbc] sm:$0xf]
      %v1499 = vunpack.c.l.b16 %v1435
      %v1500 = vunpack.c.h.b16 %v1435
      %v1501 = vunpack.c.l.b16 %v1436
      %v1502 = vunpack.c.l.b16 %v1437
      %v1503 = vunpack.c.h.b16 %v1437
      %v1504 = vunpack.c.l.b16 %v1438
      %v1505 = vunpack.c.l.b16 %v1439
      %v1506 = vunpack.c.h.b16 %v1439
      %v1507 = vunpack.c.l.b16 %v1440
      %v1508 = vunpack.c.l.b16 %v1441
      %v1509 = vunpack.c.h.b16 %v1441
      %v1510 = vunpack.c.l.b16 %v1442
      %v1511 = vunpack.c.l.b16 %v1443
      %v1512 = vunpack.c.h.b16 %v1443
      %v1513 = vunpack.c.l.b16 %v1444
      %v1514 = vunpack.c.l.b16 %v1445
      %v1515 = vunpack.c.h.b16 %v1445
      %v1516 = vunpack.c.l.b16 %v1446
      %v1517 = vunpack.c.l.b16 %v1447
      %v1518 = vunpack.c.h.b16 %v1447
      %v1519 = vunpack.c.l.b16 %v1448
      %v1520 = vunpack.c.l.b16 %v1449
      %v1521 = vunpack.c.h.b16 %v1449
      %v1522 = vunpack.c.l.b16 %v1450
      %v1523 = vunpack.c.l.b16 %v1451
      %v1524 = vunpack.c.h.b16 %v1451
      %v1525 = vunpack.c.l.b16 %v1452
      %v1526 = vunpack.c.l.b16 %v1453
      %v1527 = vunpack.c.h.b16 %v1453
      %v1528 = vunpack.c.l.b16 %v1454
      %v1529 = vunpack.c.l.b16 %v1455
      %v1530 = vunpack.c.h.b16 %v1455
      %v1531 = vunpack.c.l.b16 %v1456
      %v1532 = vunpack.c.l.b16 %v1457
      %v1533 = vunpack.c.h.b16 %v1457
      %v1534 = vunpack.c.l.b16 %v1458
      %v1535 = vunpack.c.l.b16 %v1459
      %v1536 = vunpack.c.h.b16 %v1459
      %v1537 = vunpack.c.l.b16 %v1460
      %v1538 = vunpack.c.l.b16 %v1461
      %v1539 = vunpack.c.h.b16 %v1461
      %v1540 = vunpack.c.l.b16 %v1462
      %v1541 = vunpack.c.l.b16 %v1463
      %v1542 = vunpack.c.h.b16 %v1463
      %v1543 = vunpack.c.l.b16 %v1464
      %v1544 = vunpack.c.l.b16 %v1465
      %v1545 = vunpack.c.h.b16 %v1465
      %v1546 = vunpack.c.l.b16 %v1466
      %v1547 = vpack.c.b16 %v1502, %v1499
      %v1548 = vpack.c.b16 %v1503, %v1500
      %v1549 = vpack.c.b16 %v1504, %v1501
      %v1550 = vpack.c.b16 %v1508, %v1505
      %v1551 = vpack.c.b16 %v1509, %v1506
      %v1552 = vpack.c.b16 %v1510, %v1507
      %v1553 = vpack.c.b16 %v1514, %v1511
      %v1554 = vpack.c.b16 %v1515, %v1512
      %v1555 = vpack.c.b16 %v1516, %v1513
      %v1556 = vpack.c.b16 %v1520, %v1517
      %v1557 = vpack.c.b16 %v1521, %v1518
      %v1558 = vpack.c.b16 %v1522, %v1519
      %v1559 = vpack.c.b16 %v1526, %v1523
      %v1560 = vpack.c.b16 %v1527, %v1524
      %v1561 = vpack.c.b16 %v1528, %v1525
      %v1562 = vpack.c.b16 %v1532, %v1529
      %v1563 = vpack.c.b16 %v1533, %v1530
      %v1564 = vpack.c.b16 %v1534, %v1531
      %v1565 = vpack.c.b16 %v1538, %v1535
      %v1566 = vpack.c.b16 %v1539, %v1536
      %v1567 = vpack.c.b16 %v1540, %v1537
      %v1568 = vpack.c.b16 %v1544, %v1541
      %v1569 = vpack.c.b16 %v1545, %v1542
      %v1570 = vpack.c.b16 %v1546, %v1543
      %1595 = vmatpush.bf16.msra.mxu0 %v1568
      %1596 = vmatpush.bf16.msra.mxu0 %v1565
      %1597 = vmatpush.bf16.msra.mxu0 %v1562
      %1598 = vmatpush.bf16.msra.mxu0 %v1559
      %1599 = vmatpush.bf16.msra.mxu0 %v1556
      %1600 = vmatpush.bf16.msra.mxu0 %v1553
      %1601 = vmatpush.bf16.msra.mxu0 %v1550
      %1602 = vmatpush.bf16.msra.mxu0 %v1547
      %1603 = vmatmul.bf16.gmra.mxu0 %v1405
      %v1604 = vpop.f32.mrf.mxu0
      %v1605 = vadd.f32 0.0, %v1604
      %v1606 = vpop.f32.mrf.mxu0
      %v1607 = vadd.f32 0.0, %v1606
      %1608 = vmatmul.bf16.gmra.mxu0 %v1409
      %v1609 = vpop.f32.mrf.mxu0
      %v1610 = vadd.f32 0.0, %v1609
      %v1611 = vpop.f32.mrf.mxu0
      %v1612 = vadd.f32 0.0, %v1611
      %1613 = vmatmul.bf16.gmra.mxu0 %v1413
      %v1614 = vpop.f32.mrf.mxu0
      %v1615 = vadd.f32 0.0, %v1614
      %v1616 = vpop.f32.mrf.mxu0
      %v1617 = vadd.f32 0.0, %v1616
      %1618 = vmatmul.bf16.gmra.mxu0 %v1417
      %v1619 = vpop.f32.mrf.mxu0
      %v1620 = vadd.f32 0.0, %v1619
      %v1621 = vpop.f32.mrf.mxu0
      %v1622 = vadd.f32 0.0, %v1621
      %1623 = vmatmul.bf16.gmra.mxu0 %v1421
      %v1624 = vpop.f32.mrf.mxu0
      %v1625 = vadd.f32 0.0, %v1624
      %v1626 = vpop.f32.mrf.mxu0
      %v1627 = vadd.f32 0.0, %v1626
      %1628 = vmatmul.bf16.gmra.mxu0 %v1425
      %v1629 = vpop.f32.mrf.mxu0
      %v1630 = vadd.f32 0.0, %v1629
      %v1631 = vpop.f32.mrf.mxu0
      %v1632 = vadd.f32 0.0, %v1631
      %1633 = vmatmul.bf16.gmra.mxu0 %v1429
      %v1634 = vpop.f32.mrf.mxu0
      %v1635 = vadd.f32 0.0, %v1634
      %v1636 = vpop.f32.mrf.mxu0
      %v1637 = vadd.f32 0.0, %v1636
      %1638 = vmatmul.bf16.gmra.mxu0 %v1433
      %v1639 = vpop.f32.mrf.mxu0
      %v1640 = vadd.f32 0.0, %v1639
      %v1641 = vpop.f32.mrf.mxu0
      %v1642 = vadd.f32 0.0, %v1641
      %1643 = vdwg.mxu0
      %1644 = vmatpush.bf16.msra.mxu0 %v1569
      %1645 = vmatpush.bf16.msra.mxu0 %v1566
      %1646 = vmatpush.bf16.msra.mxu0 %v1563
      %1647 = vmatpush.bf16.msra.mxu0 %v1560
      %1648 = vmatpush.bf16.msra.mxu0 %v1557
      %1649 = vmatpush.bf16.msra.mxu0 %v1554
      %1650 = vmatpush.bf16.msra.mxu0 %v1551
      %1651 = vmatpush.bf16.msra.mxu0 %v1548
      %1652 = vmatmul.bf16.gmra.mxu0 %v1405
      %v1653 = vpop.f32.mrf.mxu0
      %v1654 = vadd.f32 0.0, %v1653
      %v1655 = vpop.f32.mrf.mxu0
      %v1656 = vadd.f32 0.0, %v1655
      %1657 = vmatmul.bf16.gmra.mxu0 %v1409
      %v1658 = vpop.f32.mrf.mxu0
      %v1659 = vadd.f32 0.0, %v1658
      %v1660 = vpop.f32.mrf.mxu0
      %v1661 = vadd.f32 0.0, %v1660
      %1662 = vmatmul.bf16.gmra.mxu0 %v1413
      %v1663 = vpop.f32.mrf.mxu0
      %v1664 = vadd.f32 0.0, %v1663
      %v1665 = vpop.f32.mrf.mxu0
      %v1666 = vadd.f32 0.0, %v1665
      %1667 = vmatmul.bf16.gmra.mxu0 %v1417
      %v1668 = vpop.f32.mrf.mxu0
      %v1669 = vadd.f32 0.0, %v1668
      %v1670 = vpop.f32.mrf.mxu0
      %v1671 = vadd.f32 0.0, %v1670
      %1672 = vmatmul.bf16.gmra.mxu0 %v1421
      %v1673 = vpop.f32.mrf.mxu0
      %v1674 = vadd.f32 0.0, %v1673
      %v1675 = vpop.f32.mrf.mxu0
      %v1676 = vadd.f32 0.0, %v1675
      %1677 = vmatmul.bf16.gmra.mxu0 %v1425
      %v1678 = vpop.f32.mrf.mxu0
      %v1679 = vadd.f32 0.0, %v1678
      %v1680 = vpop.f32.mrf.mxu0
      %v1681 = vadd.f32 0.0, %v1680
      %1682 = vmatmul.bf16.gmra.mxu0 %v1429
      %v1683 = vpop.f32.mrf.mxu0
      %v1684 = vadd.f32 0.0, %v1683
      %v1685 = vpop.f32.mrf.mxu0
      %v1686 = vadd.f32 0.0, %v1685
      %1687 = vmatmul.bf16.gmra.mxu0 %v1433
      %v1688 = vpop.f32.mrf.mxu0
      %v1689 = vadd.f32 0.0, %v1688
      %v1690 = vpop.f32.mrf.mxu0
      %v1691 = vadd.f32 0.0, %v1690
      %1692 = vdwg.mxu0
      %1693 = vmatpush.bf16.msra.mxu0 %v1570
      %1694 = vmatpush.bf16.msra.mxu0 %v1567
      %1695 = vmatpush.bf16.msra.mxu0 %v1564
      %1696 = vmatpush.bf16.msra.mxu0 %v1561
      %1697 = vmatpush.bf16.msra.mxu0 %v1558
      %1698 = vmatpush.bf16.msra.mxu0 %v1555
      %1699 = vmatpush.bf16.msra.mxu0 %v1552
      %1700 = vmatpush.bf16.msra.mxu0 %v1549
      %1701 = vmatmul.bf16.gmra.mxu0 %v1405
      %v1702 = vpop.f32.mrf.mxu0
      %v1703 = vadd.f32 0.0, %v1702
      %v1704 = vpop.f32.mrf.mxu0
      %v1705 = vadd.f32 0.0, %v1704
      %1706 = vmatmul.bf16.gmra.mxu0 %v1409
      %v1707 = vpop.f32.mrf.mxu0
      %v1708 = vadd.f32 0.0, %v1707
      %v1709 = vpop.f32.mrf.mxu0
      %v1710 = vadd.f32 0.0, %v1709
      %1711 = vmatmul.bf16.gmra.mxu0 %v1413
      %v1712 = vpop.f32.mrf.mxu0
      %v1713 = vadd.f32 0.0, %v1712
      %v1714 = vpop.f32.mrf.mxu0
      %v1715 = vadd.f32 0.0, %v1714
      %1716 = vmatmul.bf16.gmra.mxu0 %v1417
      %v1717 = vpop.f32.mrf.mxu0
      %v1718 = vadd.f32 0.0, %v1717
      %v1719 = vpop.f32.mrf.mxu0
      %v1720 = vadd.f32 0.0, %v1719
      %1721 = vmatmul.bf16.gmra.mxu0 %v1421
      %v1722 = vpop.f32.mrf.mxu0
      %v1723 = vadd.f32 0.0, %v1722
      %v1724 = vpop.f32.mrf.mxu0
      %v1725 = vadd.f32 0.0, %v1724
      %1726 = vmatmul.bf16.gmra.mxu0 %v1425
      %v1727 = vpop.f32.mrf.mxu0
      %v1728 = vadd.f32 0.0, %v1727
      %v1729 = vpop.f32.mrf.mxu0
      %v1730 = vadd.f32 0.0, %v1729
      %1731 = vmatmul.bf16.gmra.mxu0 %v1429
      %v1732 = vpop.f32.mrf.mxu0
      %v1733 = vadd.f32 0.0, %v1732
      %v1734 = vpop.f32.mrf.mxu0
      %v1735 = vadd.f32 0.0, %v1734
      %1736 = vmatmul.bf16.gmra.mxu0 %v1433
      %v1737 = vpop.f32.mrf.mxu0
      %v1738 = vadd.f32 0.0, %v1737
      %v1739 = vpop.f32.mrf.mxu0
      %v1740 = vadd.f32 0.0, %v1739
      %1741 = vdwg.mxu0
      %v1742 = vrot.slane %v1605, 7
      %v1743 = vrot.slane %v1607, 7
      %v1744 = vrot.slane %v1610, 7
      %v1745 = vrot.slane %v1612, 7
      %v1746 = vrot.slane %v1615, 7
      %v1747 = vrot.slane %v1617, 7
      %v1748 = vrot.slane %v1620, 7
      %v1749 = vrot.slane %v1622, 7
      %v1750 = vrot.slane %v1625, 7
      %v1751 = vrot.slane %v1627, 7
      %v1752 = vrot.slane %v1630, 7
      %v1753 = vrot.slane %v1632, 7
      %v1754 = vrot.slane %v1635, 7
      %v1755 = vrot.slane %v1637, 7
      %v1756 = vrot.slane %v1640, 7
      %v1757 = vrot.slane %v1642, 7
      %v1758 = vsel %vm704, %v1756, %v1757
      %v1759 = vsel %vm704, %v1755, %v1756
      %v1760 = vsel %vm704, %v1754, %v1755
      %v1761 = vsel %vm704, %v1753, %v1754
      %v1762 = vsel %vm704, %v1752, %v1753
      %v1763 = vsel %vm704, %v1751, %v1752
      %v1764 = vsel %vm704, %v1750, %v1751
      %v1765 = vsel %vm704, %v1749, %v1750
      %v1766 = vsel %vm704, %v1748, %v1749
      %v1767 = vsel %vm704, %v1747, %v1748
      %v1768 = vsel %vm704, %v1746, %v1747
      %v1769 = vsel %vm704, %v1745, %v1746
      %v1770 = vsel %vm704, %v1744, %v1745
      %v1771 = vsel %vm704, %v1743, %v1744
      %v1772 = vsel %vm704, %v1742, %v1743
      %v1773 = vsel %vm704, %v1757, %v1742
      %v1774 = vmul.f32 %v1773, %v724
      %v1775 = vmul.f32 %v1772, %v729
      %v1776 = vmul.f32 %v1771, %v734
      %v1777 = vmul.f32 %v1770, %v739
      %v1778 = vmul.f32 %v1769, %v744
      %v1779 = vmul.f32 %v1768, %v749
      %v1780 = vmul.f32 %v1767, %v754
      %v1781 = vmul.f32 %v1766, %v759
      %v1782 = vmul.f32 %v1765, %v764
      %v1783 = vmul.f32 %v1764, %v769
      %v1784 = vmul.f32 %v1763, %v774
      %v1785 = vmul.f32 %v1762, %v779
      %v1786 = vmul.f32 %v1761, %v784
      %v1787 = vmul.f32 %v1760, %v789
      %v1788 = vmul.f32 %v1759, %v794
      %v1789 = vmul.f32 %v1758, %v799
      %v1790 = vrot.slane %v1703, 1
      %v1791 = vrot.slane %v1705, 1
      %v1792 = vrot.slane %v1708, 1
      %v1793 = vrot.slane %v1710, 1
      %v1794 = vrot.slane %v1713, 1
      %v1795 = vrot.slane %v1715, 1
      %v1796 = vrot.slane %v1718, 1
      %v1797 = vrot.slane %v1720, 1
      %v1798 = vrot.slane %v1723, 1
      %v1799 = vrot.slane %v1725, 1
      %v1800 = vrot.slane %v1728, 1
      %v1801 = vrot.slane %v1730, 1
      %v1802 = vrot.slane %v1733, 1
      %v1803 = vrot.slane %v1735, 1
      %v1804 = vrot.slane %v1738, 1
      %v1805 = vrot.slane %v1740, 1
      %v1806 = vsel %vm833, %v1804, %v1805
      %v1807 = vsel %vm833, %v1803, %v1804
      %v1808 = vsel %vm833, %v1802, %v1803
      %v1809 = vsel %vm833, %v1801, %v1802
      %v1810 = vsel %vm833, %v1800, %v1801
      %v1811 = vsel %vm833, %v1799, %v1800
      %v1812 = vsel %vm833, %v1798, %v1799
      %v1813 = vsel %vm833, %v1797, %v1798
      %v1814 = vsel %vm833, %v1796, %v1797
      %v1815 = vsel %vm833, %v1795, %v1796
      %v1816 = vsel %vm833, %v1794, %v1795
      %v1817 = vsel %vm833, %v1793, %v1794
      %v1818 = vsel %vm833, %v1792, %v1793
      %v1819 = vsel %vm833, %v1791, %v1792
      %v1820 = vsel %vm833, %v1790, %v1791
      %v1821 = vsel %vm833, %v1805, %v1790
      %v1822 = vmul.f32 %v1820, %v852
      %v1823 = vmul.f32 %v1819, %v856
      %v1824 = vmul.f32 %v1818, %v860
      %v1825 = vmul.f32 %v1817, %v864
      %v1826 = vmul.f32 %v1816, %v868
      %v1827 = vmul.f32 %v1815, %v872
      %v1828 = vmul.f32 %v1814, %v876
      %v1829 = vmul.f32 %v1813, %v880
      %v1830 = vmul.f32 %v1812, %v884
      %v1831 = vmul.f32 %v1811, %v888
      %v1832 = vmul.f32 %v1810, %v892
      %v1833 = vmul.f32 %v1809, %v896
      %v1834 = vmul.f32 %v1808, %v900
      %v1835 = vmul.f32 %v1807, %v904
      %v1836 = vmul.f32 %v1806, %v908
      %v1837 = vmul.f32 %v1821, %v912
      %v1838 = vadd.f32 %v1654, %v1774
      %v1839 = vadd.f32 %v1656, %v1775
      %v1840 = vadd.f32 %v1659, %v1776
      %v1841 = vadd.f32 %v1661, %v1777
      %v1842 = vadd.f32 %v1664, %v1778
      %v1843 = vadd.f32 %v1666, %v1779
      %v1844 = vadd.f32 %v1669, %v1780
      %v1845 = vadd.f32 %v1671, %v1781
      %v1846 = vadd.f32 %v1674, %v1782
      %v1847 = vadd.f32 %v1676, %v1783
      %v1848 = vadd.f32 %v1679, %v1784
      %v1849 = vadd.f32 %v1681, %v1785
      %v1850 = vadd.f32 %v1684, %v1786
      %v1851 = vadd.f32 %v1686, %v1787
      %v1852 = vadd.f32 %v1689, %v1788
      %v1853 = vadd.f32 %v1691, %v1789
      %v1854 = vadd.f32 %v1838, %v1822
      %v1855 = vadd.f32 %v1839, %v1823
      %v1856 = vadd.f32 %v1840, %v1824
      %v1857 = vadd.f32 %v1841, %v1825
      %v1858 = vadd.f32 %v1842, %v1826
      %v1859 = vadd.f32 %v1843, %v1827
      %v1860 = vadd.f32 %v1844, %v1828
      %v1861 = vadd.f32 %v1845, %v1829
      %v1862 = vadd.f32 %v1846, %v1830
      %v1863 = vadd.f32 %v1847, %v1831
      %v1864 = vadd.f32 %v1848, %v1832
      %v1865 = vadd.f32 %v1849, %v1833
      %v1866 = vadd.f32 %v1850, %v1834
      %v1867 = vadd.f32 %v1851, %v1835
      %v1868 = vadd.f32 %v1852, %v1836
      %v1869 = vadd.f32 %v1853, %v1837
      %v1870 = vld [vmem:[%s6] sm:$0x1]
      %v1871 = vperm.slane %v1870, 0
      %v1872 = vadd.f32 %v1854, %v1871
      %v1873 = vadd.f32 %v1855, %v1871
      %v1874 = vadd.f32 %v1856, %v1871
      %v1875 = vadd.f32 %v1857, %v1871
      %v1876 = vadd.f32 %v1858, %v1871
      %v1877 = vadd.f32 %v1859, %v1871
      %v1878 = vadd.f32 %v1860, %v1871
      %v1879 = vadd.f32 %v1861, %v1871
      %v1880 = vadd.f32 %v1862, %v1871
      %v1881 = vadd.f32 %v1863, %v1871
      %v1882 = vadd.f32 %v1864, %v1871
      %v1883 = vadd.f32 %v1865, %v1871
      %v1884 = vadd.f32 %v1866, %v1871
      %v1885 = vadd.f32 %v1867, %v1871
      %v1886 = vadd.f32 %v1868, %v1871
      %v1887 = vadd.f32 %v1869, %v1871
      %vm1888 = vcmp.gt.f32.partialorder %v1872, 0.0
      %vm1889 = vcmp.gt.f32.partialorder %v1873, 0.0
      %vm1890 = vcmp.gt.f32.partialorder %v1874, 0.0
      %vm1891 = vcmp.gt.f32.partialorder %v1875, 0.0
      %vm1892 = vcmp.gt.f32.partialorder %v1876, 0.0
      %vm1893 = vcmp.gt.f32.partialorder %v1877, 0.0
      %vm1894 = vcmp.gt.f32.partialorder %v1878, 0.0
      %vm1895 = vcmp.gt.f32.partialorder %v1879, 0.0
      %vm1896 = vcmp.gt.f32.partialorder %v1880, 0.0
      %vm1897 = vcmp.gt.f32.partialorder %v1881, 0.0
      %vm1898 = vcmp.gt.f32.partialorder %v1882, 0.0
      %vm1899 = vcmp.gt.f32.partialorder %v1883, 0.0
      %vm1900 = vcmp.gt.f32.partialorder %v1884, 0.0
      %vm1901 = vcmp.gt.f32.partialorder %v1885, 0.0
      %vm1902 = vcmp.gt.f32.partialorder %v1886, 0.0
      %vm1903 = vcmp.gt.f32.partialorder %v1887, 0.0
      %v1904 = vld [vmem:[%s6 + $0x1] sm:$0x1]
      %v1905 = vperm.slane %v1904, 0
      %v1906 = vmul.f32 %v1905, %v1872
      %v1907 = vmul.f32 %v1905, %v1873
      %v1908 = vmul.f32 %v1905, %v1874
      %v1909 = vmul.f32 %v1905, %v1875
      %v1910 = vmul.f32 %v1905, %v1876
      %v1911 = vmul.f32 %v1905, %v1877
      %v1912 = vmul.f32 %v1905, %v1878
      %v1913 = vmul.f32 %v1905, %v1879
      %v1914 = vmul.f32 %v1905, %v1880
      %v1915 = vmul.f32 %v1905, %v1881
      %v1916 = vmul.f32 %v1905, %v1882
      %v1917 = vmul.f32 %v1905, %v1883
      %v1918 = vmul.f32 %v1905, %v1884
      %v1919 = vmul.f32 %v1905, %v1885
      %v1920 = vmul.f32 %v1905, %v1886
      %v1921 = vmul.f32 %v1905, %v1887
      %v1922 = vsel %vm1888, %v1872, %v1906
      %v1923 = vsel %vm1889, %v1873, %v1907
      %v1924 = vsel %vm1890, %v1874, %v1908
      %v1925 = vsel %vm1891, %v1875, %v1909
      %v1926 = vsel %vm1892, %v1876, %v1910
      %v1927 = vsel %vm1893, %v1877, %v1911
      %v1928 = vsel %vm1894, %v1878, %v1912
      %v1929 = vsel %vm1895, %v1879, %v1913
      %v1930 = vsel %vm1896, %v1880, %v1914
      %v1931 = vsel %vm1897, %v1881, %v1915
      %v1932 = vsel %vm1898, %v1882, %v1916
      %v1933 = vsel %vm1899, %v1883, %v1917
      %v1934 = vsel %vm1900, %v1884, %v1918
      %v1935 = vsel %vm1901, %v1885, %v1919
      %v1936 = vsel %vm1902, %v1886, %v1920
      %v1937 = vsel %vm1903, %v1887, %v1921
      %v1938 = vpack.c.bf16 %v1923, %v1922
      %v1939 = vpack.c.bf16 %v1925, %v1924
      %v1940 = vpack.c.bf16 %v1927, %v1926
      %v1941 = vpack.c.bf16 %v1929, %v1928
      %v1942 = vpack.c.bf16 %v1931, %v1930
      %v1943 = vpack.c.bf16 %v1933, %v1932
      %v1944 = vpack.c.bf16 %v1935, %v1934
      %v1945 = vpack.c.bf16 %v1937, %v1936
      %v1946 = vld [vmem:[%s7] sm:$0xff]
      %v1947 = vld [vmem:[%s7 + $0x8] sm:$0xf]
      %v1948 = vld [vmem:[%s7 + $0xc] sm:$0xff]
      %v1949 = vld [vmem:[%s7 + $0x14] sm:$0xf]
      %v1950 = vld [vmem:[%s7 + $0x18] sm:$0xff]
      %v1951 = vld [vmem:[%s7 + $0x20] sm:$0xf]
      %v1952 = vld [vmem:[%s7 + $0x24] sm:$0xff]
      %v1953 = vld [vmem:[%s7 + $0x2c] sm:$0xf]
      %v1954 = vld [vmem:[%s7 + $0x30] sm:$0xff]
      %v1955 = vld [vmem:[%s7 + $0x38] sm:$0xf]
      %v1956 = vld [vmem:[%s7 + $0x3c] sm:$0xff]
      %v1957 = vld [vmem:[%s7 + $0x44] sm:$0xf]
      %v1958 = vld [vmem:[%s7 + $0x48] sm:$0xff]
      %v1959 = vld [vmem:[%s7 + $0x50] sm:$0xf]
      %v1960 = vld [vmem:[%s7 + $0x54] sm:$0xff]
      %v1961 = vld [vmem:[%s7 + $0x5c] sm:$0xf]
      %v1962 = vld [vmem:[%s7 + $0x60] sm:$0xff]
      %v1963 = vld [vmem:[%s7 + $0x68] sm:$0xf]
      %v1964 = vld [vmem:[%s7 + $0x6c] sm:$0xff]
      %v1965 = vld [vmem:[%s7 + $0x74] sm:$0xf]
      %v1966 = vld [vmem:[%s7 + $0x78] sm:$0xff]
      %v1967 = vld [vmem:[%s7 + $0x80] sm:$0xf]
      %v1968 = vld [vmem:[%s7 + $0x84] sm:$0xff]
      %v1969 = vld [vmem:[%s7 + $0x8c] sm:$0xf]
      %v1970 = vld [vmem:[%s7 + $0x90] sm:$0xff]
      %v1971 = vld [vmem:[%s7 + $0x98] sm:$0xf]
      %v1972 = vld [vmem:[%s7 + $0x9c] sm:$0xff]
      %v1973 = vld [vmem:[%s7 + $0xa4] sm:$0xf]
      %v1974 = vld [vmem:[%s7 + $0xa8] sm:$0xff]
      %v1975 = vld [vmem:[%s7 + $0xb0] sm:$0xf]
      %v1976 = vld [vmem:[%s7 + $0xb4] sm:$0xff]
      %v1977 = vld [vmem:[%s7 + $0xbc] sm:$0xf]
      %v2010 = vunpack.c.l.b16 %v1946
      %v2011 = vunpack.c.h.b16 %v1946
      %v2012 = vunpack.c.l.b16 %v1947
      %v2013 = vunpack.c.l.b16 %v1948
      %v2014 = vunpack.c.h.b16 %v1948
      %v2015 = vunpack.c.l.b16 %v1949
      %v2016 = vunpack.c.l.b16 %v1950
      %v2017 = vunpack.c.h.b16 %v1950
      %v2018 = vunpack.c.l.b16 %v1951
      %v2019 = vunpack.c.l.b16 %v1952
      %v2020 = vunpack.c.h.b16 %v1952
      %v2021 = vunpack.c.l.b16 %v1953
      %v2022 = vunpack.c.l.b16 %v1954
      %v2023 = vunpack.c.h.b16 %v1954
      %v2024 = vunpack.c.l.b16 %v1955
      %v2025 = vunpack.c.l.b16 %v1956
      %v2026 = vunpack.c.h.b16 %v1956
      %v2027 = vunpack.c.l.b16 %v1957
      %v2028 = vunpack.c.l.b16 %v1958
      %v2029 = vunpack.c.h.b16 %v1958
      %v2030 = vunpack.c.l.b16 %v1959
      %v2031 = vunpack.c.l.b16 %v1960
      %v2032 = vunpack.c.h.b16 %v1960
      %v2033 = vunpack.c.l.b16 %v1961
      %v2034 = vunpack.c.l.b16 %v1962
      %v2035 = vunpack.c.h.b16 %v1962
      %v2036 = vunpack.c.l.b16 %v1963
      %v2037 = vunpack.c.l.b16 %v1964
      %v2038 = vunpack.c.h.b16 %v1964
      %v2039 = vunpack.c.l.b16 %v1965
      %v2040 = vunpack.c.l.b16 %v1966
      %v2041 = vunpack.c.h.b16 %v1966
      %v2042 = vunpack.c.l.b16 %v1967
      %v2043 = vunpack.c.l.b16 %v1968
      %v2044 = vunpack.c.h.b16 %v1968
      %v2045 = vunpack.c.l.b16 %v1969
      %v2046 = vunpack.c.l.b16 %v1970
      %v2047 = vunpack.c.h.b16 %v1970
      %v2048 = vunpack.c.l.b16 %v1971
      %v2049 = vunpack.c.l.b16 %v1972
      %v2050 = vunpack.c.h.b16 %v1972
      %v2051 = vunpack.c.l.b16 %v1973
      %v2052 = vunpack.c.l.b16 %v1974
      %v2053 = vunpack.c.h.b16 %v1974
      %v2054 = vunpack.c.l.b16 %v1975
      %v2055 = vunpack.c.l.b16 %v1976
      %v2056 = vunpack.c.h.b16 %v1976
      %v2057 = vunpack.c.l.b16 %v1977
      %v2058 = vpack.c.b16 %v2013, %v2010
      %v2059 = vpack.c.b16 %v2014, %v2011
      %v2060 = vpack.c.b16 %v2015, %v2012
      %v2061 = vpack.c.b16 %v2019, %v2016
      %v2062 = vpack.c.b16 %v2020, %v2017
      %v2063 = vpack.c.b16 %v2021, %v2018
      %v2064 = vpack.c.b16 %v2025, %v2022
      %v2065 = vpack.c.b16 %v2026, %v2023
      %v2066 = vpack.c.b16 %v2027, %v2024
      %v2067 = vpack.c.b16 %v2031, %v2028
      %v2068 = vpack.c.b16 %v2032, %v2029
      %v2069 = vpack.c.b16 %v2033, %v2030
      %v2070 = vpack.c.b16 %v2037, %v2034
      %v2071 = vpack.c.b16 %v2038, %v2035
      %v2072 = vpack.c.b16 %v2039, %v2036
      %v2073 = vpack.c.b16 %v2043, %v2040
      %v2074 = vpack.c.b16 %v2044, %v2041
      %v2075 = vpack.c.b16 %v2045, %v2042
      %v2076 = vpack.c.b16 %v2049, %v2046
      %v2077 = vpack.c.b16 %v2050, %v2047
      %v2078 = vpack.c.b16 %v2051, %v2048
      %v2079 = vpack.c.b16 %v2055, %v2052
      %v2080 = vpack.c.b16 %v2056, %v2053
      %v2081 = vpack.c.b16 %v2057, %v2054
      %2106 = vmatpush.bf16.msra.mxu0 %v2079
      %2107 = vmatpush.bf16.msra.mxu0 %v2076
      %2108 = vmatpush.bf16.msra.mxu0 %v2073
      %2109 = vmatpush.bf16.msra.mxu0 %v2070
      %2110 = vmatpush.bf16.msra.mxu0 %v2067
      %2111 = vmatpush.bf16.msra.mxu0 %v2064
      %2112 = vmatpush.bf16.msra.mxu0 %v2061
      %2113 = vmatpush.bf16.msra.mxu0 %v2058
      %2114 = vmatmul.bf16.gmra.mxu0 %v1938
      %v2115 = vpop.f32.mrf.mxu0
      %v2116 = vadd.f32 0.0, %v2115
      %v2117 = vpop.f32.mrf.mxu0
      %v2118 = vadd.f32 0.0, %v2117
      %2119 = vmatmul.bf16.gmra.mxu0 %v1939
      %v2120 = vpop.f32.mrf.mxu0
      %v2121 = vadd.f32 0.0, %v2120
      %v2122 = vpop.f32.mrf.mxu0
      %v2123 = vadd.f32 0.0, %v2122
      %2124 = vmatmul.bf16.gmra.mxu0 %v1940
      %v2125 = vpop.f32.mrf.mxu0
      %v2126 = vadd.f32 0.0, %v2125
      %v2127 = vpop.f32.mrf.mxu0
      %v2128 = vadd.f32 0.0, %v2127
      %2129 = vmatmul.bf16.gmra.mxu0 %v1941
      %v2130 = vpop.f32.mrf.mxu0
      %v2131 = vadd.f32 0.0, %v2130
      %v2132 = vpop.f32.mrf.mxu0
      %v2133 = vadd.f32 0.0, %v2132
      %2134 = vmatmul.bf16.gmra.mxu0 %v1942
      %v2135 = vpop.f32.mrf.mxu0
      %v2136 = vadd.f32 0.0, %v2135
      %v2137 = vpop.f32.mrf.mxu0
      %v2138 = vadd.f32 0.0, %v2137
      %2139 = vmatmul.bf16.gmra.mxu0 %v1943
      %v2140 = vpop.f32.mrf.mxu0
      %v2141 = vadd.f32 0.0, %v2140
      %v2142 = vpop.f32.mrf.mxu0
      %v2143 = vadd.f32 0.0, %v2142
      %2144 = vmatmul.bf16.gmra.mxu0 %v1944
      %v2145 = vpop.f32.mrf.mxu0
      %v2146 = vadd.f32 0.0, %v2145
      %v2147 = vpop.f32.mrf.mxu0
      %v2148 = vadd.f32 0.0, %v2147
      %2149 = vmatmul.bf16.gmra.mxu0 %v1945
      %v2150 = vpop.f32.mrf.mxu0
      %v2151 = vadd.f32 0.0, %v2150
      %v2152 = vpop.f32.mrf.mxu0
      %v2153 = vadd.f32 0.0, %v2152
      %2154 = vdwg.mxu0
      %2155 = vmatpush.bf16.msra.mxu0 %v2080
      %2156 = vmatpush.bf16.msra.mxu0 %v2077
      %2157 = vmatpush.bf16.msra.mxu0 %v2074
      %2158 = vmatpush.bf16.msra.mxu0 %v2071
      %2159 = vmatpush.bf16.msra.mxu0 %v2068
      %2160 = vmatpush.bf16.msra.mxu0 %v2065
      %2161 = vmatpush.bf16.msra.mxu0 %v2062
      %2162 = vmatpush.bf16.msra.mxu0 %v2059
      %2163 = vmatmul.bf16.gmra.mxu0 %v1938
      %v2164 = vpop.f32.mrf.mxu0
      %v2165 = vadd.f32 0.0, %v2164
      %v2166 = vpop.f32.mrf.mxu0
      %v2167 = vadd.f32 0.0, %v2166
      %2168 = vmatmul.bf16.gmra.mxu0 %v1939
      %v2169 = vpop.f32.mrf.mxu0
      %v2170 = vadd.f32 0.0, %v2169
      %v2171 = vpop.f32.mrf.mxu0
      %v2172 = vadd.f32 0.0, %v2171
      %2173 = vmatmul.bf16.gmra.mxu0 %v1940
      %v2174 = vpop.f32.mrf.mxu0
      %v2175 = vadd.f32 0.0, %v2174
      %v2176 = vpop.f32.mrf.mxu0
      %v2177 = vadd.f32 0.0, %v2176
      %2178 = vmatmul.bf16.gmra.mxu0 %v1941
      %v2179 = vpop.f32.mrf.mxu0
      %v2180 = vadd.f32 0.0, %v2179
      %v2181 = vpop.f32.mrf.mxu0
      %v2182 = vadd.f32 0.0, %v2181
      %2183 = vmatmul.bf16.gmra.mxu0 %v1942
      %v2184 = vpop.f32.mrf.mxu0
      %v2185 = vadd.f32 0.0, %v2184
      %v2186 = vpop.f32.mrf.mxu0
      %v2187 = vadd.f32 0.0, %v2186
      %2188 = vmatmul.bf16.gmra.mxu0 %v1943
      %v2189 = vpop.f32.mrf.mxu0
      %v2190 = vadd.f32 0.0, %v2189
      %v2191 = vpop.f32.mrf.mxu0
      %v2192 = vadd.f32 0.0, %v2191
      %2193 = vmatmul.bf16.gmra.mxu0 %v1944
      %v2194 = vpop.f32.mrf.mxu0
      %v2195 = vadd.f32 0.0, %v2194
      %v2196 = vpop.f32.mrf.mxu0
      %v2197 = vadd.f32 0.0, %v2196
      %2198 = vmatmul.bf16.gmra.mxu0 %v1945
      %v2199 = vpop.f32.mrf.mxu0
      %v2200 = vadd.f32 0.0, %v2199
      %v2201 = vpop.f32.mrf.mxu0
      %v2202 = vadd.f32 0.0, %v2201
      %2203 = vdwg.mxu0
      %2204 = vmatpush.bf16.msra.mxu0 %v2081
      %2205 = vmatpush.bf16.msra.mxu0 %v2078
      %2206 = vmatpush.bf16.msra.mxu0 %v2075
      %2207 = vmatpush.bf16.msra.mxu0 %v2072
      %2208 = vmatpush.bf16.msra.mxu0 %v2069
      %2209 = vmatpush.bf16.msra.mxu0 %v2066
      %2210 = vmatpush.bf16.msra.mxu0 %v2063
      %2211 = vmatpush.bf16.msra.mxu0 %v2060
      %2212 = vmatmul.bf16.gmra.mxu0 %v1938
      %v2213 = vpop.f32.mrf.mxu0
      %v2214 = vadd.f32 0.0, %v2213
      %v2215 = vpop.f32.mrf.mxu0
      %v2216 = vadd.f32 0.0, %v2215
      %2217 = vmatmul.bf16.gmra.mxu0 %v1939
      %v2218 = vpop.f32.mrf.mxu0
      %v2219 = vadd.f32 0.0, %v2218
      %v2220 = vpop.f32.mrf.mxu0
      %v2221 = vadd.f32 0.0, %v2220
      %2222 = vmatmul.bf16.gmra.mxu0 %v1940
      %v2223 = vpop.f32.mrf.mxu0
      %v2224 = vadd.f32 0.0, %v2223
      %v2225 = vpop.f32.mrf.mxu0
      %v2226 = vadd.f32 0.0, %v2225
      %2227 = vmatmul.bf16.gmra.mxu0 %v1941
      %v2228 = vpop.f32.mrf.mxu0
      %v2229 = vadd.f32 0.0, %v2228
      %v2230 = vpop.f32.mrf.mxu0
      %v2231 = vadd.f32 0.0, %v2230
      %2232 = vmatmul.bf16.gmra.mxu0 %v1942
      %v2233 = vpop.f32.mrf.mxu0
      %v2234 = vadd.f32 0.0, %v2233
      %v2235 = vpop.f32.mrf.mxu0
      %v2236 = vadd.f32 0.0, %v2235
      %2237 = vmatmul.bf16.gmra.mxu0 %v1943
      %v2238 = vpop.f32.mrf.mxu0
      %v2239 = vadd.f32 0.0, %v2238
      %v2240 = vpop.f32.mrf.mxu0
      %v2241 = vadd.f32 0.0, %v2240
      %2242 = vmatmul.bf16.gmra.mxu0 %v1944
      %v2243 = vpop.f32.mrf.mxu0
      %v2244 = vadd.f32 0.0, %v2243
      %v2245 = vpop.f32.mrf.mxu0
      %v2246 = vadd.f32 0.0, %v2245
      %2247 = vmatmul.bf16.gmra.mxu0 %v1945
      %v2248 = vpop.f32.mrf.mxu0
      %v2249 = vadd.f32 0.0, %v2248
      %v2250 = vpop.f32.mrf.mxu0
      %v2251 = vadd.f32 0.0, %v2250
      %2252 = vdwg.mxu0
      %v2253 = vrot.slane %v2116, 7
      %v2254 = vrot.slane %v2118, 7
      %v2255 = vrot.slane %v2121, 7
      %v2256 = vrot.slane %v2123, 7
      %v2257 = vrot.slane %v2126, 7
      %v2258 = vrot.slane %v2128, 7
      %v2259 = vrot.slane %v2131, 7
      %v2260 = vrot.slane %v2133, 7
      %v2261 = vrot.slane %v2136, 7
      %v2262 = vrot.slane %v2138, 7
      %v2263 = vrot.slane %v2141, 7
      %v2264 = vrot.slane %v2143, 7
      %v2265 = vrot.slane %v2146, 7
      %v2266 = vrot.slane %v2148, 7
      %v2267 = vrot.slane %v2151, 7
      %v2268 = vrot.slane %v2153, 7
      %v2269 = vsel %vm704, %v2267, %v2268
      %v2270 = vsel %vm704, %v2266, %v2267
      %v2271 = vsel %vm704, %v2265, %v2266
      %v2272 = vsel %vm704, %v2264, %v2265
      %v2273 = vsel %vm704, %v2263, %v2264
      %v2274 = vsel %vm704, %v2262, %v2263
      %v2275 = vsel %vm704, %v2261, %v2262
      %v2276 = vsel %vm704, %v2260, %v2261
      %v2277 = vsel %vm704, %v2259, %v2260
      %v2278 = vsel %vm704, %v2258, %v2259
      %v2279 = vsel %vm704, %v2257, %v2258
      %v2280 = vsel %vm704, %v2256, %v2257
      %v2281 = vsel %vm704, %v2255, %v2256
      %v2282 = vsel %vm704, %v2254, %v2255
      %v2283 = vsel %vm704, %v2253, %v2254
      %v2284 = vsel %vm704, %v2268, %v2253
      %v2285 = vmul.f32 %v2284, %v724
      %v2286 = vmul.f32 %v2283, %v729
      %v2287 = vmul.f32 %v2282, %v734
      %v2288 = vmul.f32 %v2281, %v739
      %v2289 = vmul.f32 %v2280, %v744
      %v2290 = vmul.f32 %v2279, %v749
      %v2291 = vmul.f32 %v2278, %v754
      %v2292 = vmul.f32 %v2277, %v759
      %v2293 = vmul.f32 %v2276, %v764
      %v2294 = vmul.f32 %v2275, %v769
      %v2295 = vmul.f32 %v2274, %v774
      %v2296 = vmul.f32 %v2273, %v779
      %v2297 = vmul.f32 %v2272, %v784
      %v2298 = vmul.f32 %v2271, %v789
      %v2299 = vmul.f32 %v2270, %v794
      %v2300 = vmul.f32 %v2269, %v799
      %v2301 = vrot.slane %v2214, 1
      %v2302 = vrot.slane %v2216, 1
      %v2303 = vrot.slane %v2219, 1
      %v2304 = vrot.slane %v2221, 1
      %v2305 = vrot.slane %v2224, 1
      %v2306 = vrot.slane %v2226, 1
      %v2307 = vrot.slane %v2229, 1
      %v2308 = vrot.slane %v2231, 1
      %v2309 = vrot.slane %v2234, 1
      %v2310 = vrot.slane %v2236, 1
      %v2311 = vrot.slane %v2239, 1
      %v2312 = vrot.slane %v2241, 1
      %v2313 = vrot.slane %v2244, 1
      %v2314 = vrot.slane %v2246, 1
      %v2315 = vrot.slane %v2249, 1
      %v2316 = vrot.slane %v2251, 1
      %v2317 = vsel %vm833, %v2315, %v2316
      %v2318 = vsel %vm833, %v2314, %v2315
      %v2319 = vsel %vm833, %v2313, %v2314
      %v2320 = vsel %vm833, %v2312, %v2313
      %v2321 = vsel %vm833, %v2311, %v2312
      %v2322 = vsel %vm833, %v2310, %v2311
      %v2323 = vsel %vm833, %v2309, %v2310
      %v2324 = vsel %vm833, %v2308, %v2309
      %v2325 = vsel %vm833, %v2307, %v2308
      %v2326 = vsel %vm833, %v2306, %v2307
      %v2327 = vsel %vm833, %v2305, %v2306
      %v2328 = vsel %vm833, %v2304, %v2305
      %v2329 = vsel %vm833, %v2303, %v2304
      %v2330 = vsel %vm833, %v2302, %v2303
      %v2331 = vsel %vm833, %v2301, %v2302
      %v2332 = vsel %vm833, %v2316, %v2301
      %v2333 = vmul.f32 %v2331, %v852
      %v2334 = vmul.f32 %v2330, %v856
      %v2335 = vmul.f32 %v2329, %v860
      %v2336 = vmul.f32 %v2328, %v864
      %v2337 = vmul.f32 %v2327, %v868
      %v2338 = vmul.f32 %v2326, %v872
      %v2339 = vmul.f32 %v2325, %v876
      %v2340 = vmul.f32 %v2324, %v880
      %v2341 = vmul.f32 %v2323, %v884
      %v2342 = vmul.f32 %v2322, %v888
      %v2343 = vmul.f32 %v2321, %v892
      %v2344 = vmul.f32 %v2320, %v896
      %v2345 = vmul.f32 %v2319, %v900
      %v2346 = vmul.f32 %v2318, %v904
      %v2347 = vmul.f32 %v2317, %v908
      %v2348 = vmul.f32 %v2332, %v912
      %v2349 = vadd.f32 %v2165, %v2285
      %v2350 = vadd.f32 %v2167, %v2286
      %v2351 = vadd.f32 %v2170, %v2287
      %v2352 = vadd.f32 %v2172, %v2288
      %v2353 = vadd.f32 %v2175, %v2289
      %v2354 = vadd.f32 %v2177, %v2290
      %v2355 = vadd.f32 %v2180, %v2291
      %v2356 = vadd.f32 %v2182, %v2292
      %v2357 = vadd.f32 %v2185, %v2293
      %v2358 = vadd.f32 %v2187, %v2294
      %v2359 = vadd.f32 %v2190, %v2295
      %v2360 = vadd.f32 %v2192, %v2296
      %v2361 = vadd.f32 %v2195, %v2297
      %v2362 = vadd.f32 %v2197, %v2298
      %v2363 = vadd.f32 %v2200, %v2299
      %v2364 = vadd.f32 %v2202, %v2300
      %v2365 = vadd.f32 %v2349, %v2333
      %v2366 = vadd.f32 %v2350, %v2334
      %v2367 = vadd.f32 %v2351, %v2335
      %v2368 = vadd.f32 %v2352, %v2336
      %v2369 = vadd.f32 %v2353, %v2337
      %v2370 = vadd.f32 %v2354, %v2338
      %v2371 = vadd.f32 %v2355, %v2339
      %v2372 = vadd.f32 %v2356, %v2340
      %v2373 = vadd.f32 %v2357, %v2341
      %v2374 = vadd.f32 %v2358, %v2342
      %v2375 = vadd.f32 %v2359, %v2343
      %v2376 = vadd.f32 %v2360, %v2344
      %v2377 = vadd.f32 %v2361, %v2345
      %v2378 = vadd.f32 %v2362, %v2346
      %v2379 = vadd.f32 %v2363, %v2347
      %v2380 = vadd.f32 %v2364, %v2348
      %v2381 = vld [vmem:[%s8] sm:$0x1]
      %v2382 = vperm.slane %v2381, 0
      %v2383 = vadd.f32 %v2365, %v2382
      %v2384 = vadd.f32 %v2366, %v2382
      %v2385 = vadd.f32 %v2367, %v2382
      %v2386 = vadd.f32 %v2368, %v2382
      %v2387 = vadd.f32 %v2369, %v2382
      %v2388 = vadd.f32 %v2370, %v2382
      %v2389 = vadd.f32 %v2371, %v2382
      %v2390 = vadd.f32 %v2372, %v2382
      %v2391 = vadd.f32 %v2373, %v2382
      %v2392 = vadd.f32 %v2374, %v2382
      %v2393 = vadd.f32 %v2375, %v2382
      %v2394 = vadd.f32 %v2376, %v2382
      %v2395 = vadd.f32 %v2377, %v2382
      %v2396 = vadd.f32 %v2378, %v2382
      %v2397 = vadd.f32 %v2379, %v2382
      %v2398 = vadd.f32 %v2380, %v2382
      %vm2399 = vcmp.gt.f32.partialorder %v2383, 0.0
      %vm2400 = vcmp.gt.f32.partialorder %v2384, 0.0
      %vm2401 = vcmp.gt.f32.partialorder %v2385, 0.0
      %vm2402 = vcmp.gt.f32.partialorder %v2386, 0.0
      %vm2403 = vcmp.gt.f32.partialorder %v2387, 0.0
      %vm2404 = vcmp.gt.f32.partialorder %v2388, 0.0
      %vm2405 = vcmp.gt.f32.partialorder %v2389, 0.0
      %vm2406 = vcmp.gt.f32.partialorder %v2390, 0.0
      %vm2407 = vcmp.gt.f32.partialorder %v2391, 0.0
      %vm2408 = vcmp.gt.f32.partialorder %v2392, 0.0
      %vm2409 = vcmp.gt.f32.partialorder %v2393, 0.0
      %vm2410 = vcmp.gt.f32.partialorder %v2394, 0.0
      %vm2411 = vcmp.gt.f32.partialorder %v2395, 0.0
      %vm2412 = vcmp.gt.f32.partialorder %v2396, 0.0
      %vm2413 = vcmp.gt.f32.partialorder %v2397, 0.0
      %vm2414 = vcmp.gt.f32.partialorder %v2398, 0.0
      %v2415 = vld [vmem:[%s8 + $0x1] sm:$0x1]
      %v2416 = vperm.slane %v2415, 0
      %v2417 = vmul.f32 %v2416, %v2383
      %v2418 = vmul.f32 %v2416, %v2384
      %v2419 = vmul.f32 %v2416, %v2385
      %v2420 = vmul.f32 %v2416, %v2386
      %v2421 = vmul.f32 %v2416, %v2387
      %v2422 = vmul.f32 %v2416, %v2388
      %v2423 = vmul.f32 %v2416, %v2389
      %v2424 = vmul.f32 %v2416, %v2390
      %v2425 = vmul.f32 %v2416, %v2391
      %v2426 = vmul.f32 %v2416, %v2392
      %v2427 = vmul.f32 %v2416, %v2393
      %v2428 = vmul.f32 %v2416, %v2394
      %v2429 = vmul.f32 %v2416, %v2395
      %v2430 = vmul.f32 %v2416, %v2396
      %v2431 = vmul.f32 %v2416, %v2397
      %v2432 = vmul.f32 %v2416, %v2398
      %v2433 = vsel %vm2399, %v2383, %v2417
      %v2434 = vsel %vm2400, %v2384, %v2418
      %v2435 = vsel %vm2401, %v2385, %v2419
      %v2436 = vsel %vm2402, %v2386, %v2420
      %v2437 = vsel %vm2403, %v2387, %v2421
      %v2438 = vsel %vm2404, %v2388, %v2422
      %v2439 = vsel %vm2405, %v2389, %v2423
      %v2440 = vsel %vm2406, %v2390, %v2424
      %v2441 = vsel %vm2407, %v2391, %v2425
      %v2442 = vsel %vm2408, %v2392, %v2426
      %v2443 = vsel %vm2409, %v2393, %v2427
      %v2444 = vsel %vm2410, %v2394, %v2428
      %v2445 = vsel %vm2411, %v2395, %v2429
      %v2446 = vsel %vm2412, %v2396, %v2430
      %v2447 = vsel %vm2413, %v2397, %v2431
      %v2448 = vsel %vm2414, %v2398, %v2432
      %v2449 = vpack.c.bf16 %v2434, %v2433
      %v2450 = vpack.c.bf16 %v2436, %v2435
      %v2451 = vpack.c.bf16 %v2438, %v2437
      %v2452 = vpack.c.bf16 %v2440, %v2439
      %v2453 = vpack.c.bf16 %v2442, %v2441
      %v2454 = vpack.c.bf16 %v2444, %v2443
      %v2455 = vpack.c.bf16 %v2446, %v2445
      %v2456 = vpack.c.bf16 %v2448, %v2447
      %v2457 = vld [vmem:[%s9] sm:$0xff]
      %v2458 = vld [vmem:[%s9 + $0x8] sm:$0xf]
      %v2459 = vld [vmem:[%s9 + $0xc] sm:$0xff]
      %v2460 = vld [vmem:[%s9 + $0x14] sm:$0xf]
      %v2461 = vld [vmem:[%s9 + $0x18] sm:$0xff]
      %v2462 = vld [vmem:[%s9 + $0x20] sm:$0xf]
      %v2463 = vld [vmem:[%s9 + $0x24] sm:$0xff]
      %v2464 = vld [vmem:[%s9 + $0x2c] sm:$0xf]
      %v2465 = vld [vmem:[%s9 + $0x30] sm:$0xff]
      %v2466 = vld [vmem:[%s9 + $0x38] sm:$0xf]
      %v2467 = vld [vmem:[%s9 + $0x3c] sm:$0xff]
      %v2468 = vld [vmem:[%s9 + $0x44] sm:$0xf]
      %v2469 = vld [vmem:[%s9 + $0x48] sm:$0xff]
      %v2470 = vld [vmem:[%s9 + $0x50] sm:$0xf]
      %v2471 = vld [vmem:[%s9 + $0x54] sm:$0xff]
      %v2472 = vld [vmem:[%s9 + $0x5c] sm:$0xf]
      %v2473 = vld [vmem:[%s9 + $0x60] sm:$0xff]
      %v2474 = vld [vmem:[%s9 + $0x68] sm:$0xf]
      %v2475 = vld [vmem:[%s9 + $0x6c] sm:$0xff]
      %v2476 = vld [vmem:[%s9 + $0x74] sm:$0xf]
      %v2477 = vld [vmem:[%s9 + $0x78] sm:$0xff]
      %v2478 = vld [vmem:[%s9 + $0x80] sm:$0xf]
      %v2479 = vld [vmem:[%s9 + $0x84] sm:$0xff]
      %v2480 = vld [vmem:[%s9 + $0x8c] sm:$0xf]
      %v2481 = vld [vmem:[%s9 + $0x90] sm:$0xff]
      %v2482 = vld [vmem:[%s9 + $0x98] sm:$0xf]
      %v2483 = vld [vmem:[%s9 + $0x9c] sm:$0xff]
      %v2484 = vld [vmem:[%s9 + $0xa4] sm:$0xf]
      %v2485 = vld [vmem:[%s9 + $0xa8] sm:$0xff]
      %v2486 = vld [vmem:[%s9 + $0xb0] sm:$0xf]
      %v2487 = vld [vmem:[%s9 + $0xb4] sm:$0xff]
      %v2488 = vld [vmem:[%s9 + $0xbc] sm:$0xf]
      %v2521 = vunpack.c.l.b16 %v2457
      %v2522 = vunpack.c.h.b16 %v2457
      %v2523 = vunpack.c.l.b16 %v2458
      %v2524 = vunpack.c.l.b16 %v2459
      %v2525 = vunpack.c.h.b16 %v2459
      %v2526 = vunpack.c.l.b16 %v2460
      %v2527 = vunpack.c.l.b16 %v2461
      %v2528 = vunpack.c.h.b16 %v2461
      %v2529 = vunpack.c.l.b16 %v2462
      %v2530 = vunpack.c.l.b16 %v2463
      %v2531 = vunpack.c.h.b16 %v2463
      %v2532 = vunpack.c.l.b16 %v2464
      %v2533 = vunpack.c.l.b16 %v2465
      %v2534 = vunpack.c.h.b16 %v2465
      %v2535 = vunpack.c.l.b16 %v2466
      %v2536 = vunpack.c.l.b16 %v2467
      %v2537 = vunpack.c.h.b16 %v2467
      %v2538 = vunpack.c.l.b16 %v2468
      %v2539 = vunpack.c.l.b16 %v2469
      %v2540 = vunpack.c.h.b16 %v2469
      %v2541 = vunpack.c.l.b16 %v2470
      %v2542 = vunpack.c.l.b16 %v2471
      %v2543 = vunpack.c.h.b16 %v2471
      %v2544 = vunpack.c.l.b16 %v2472
      %v2545 = vunpack.c.l.b16 %v2473
      %v2546 = vunpack.c.h.b16 %v2473
      %v2547 = vunpack.c.l.b16 %v2474
      %v2548 = vunpack.c.l.b16 %v2475
      %v2549 = vunpack.c.h.b16 %v2475
      %v2550 = vunpack.c.l.b16 %v2476
      %v2551 = vunpack.c.l.b16 %v2477
      %v2552 = vunpack.c.h.b16 %v2477
      %v2553 = vunpack.c.l.b16 %v2478
      %v2554 = vunpack.c.l.b16 %v2479
      %v2555 = vunpack.c.h.b16 %v2479
      %v2556 = vunpack.c.l.b16 %v2480
      %v2557 = vunpack.c.l.b16 %v2481
      %v2558 = vunpack.c.h.b16 %v2481
      %v2559 = vunpack.c.l.b16 %v2482
      %v2560 = vunpack.c.l.b16 %v2483
      %v2561 = vunpack.c.h.b16 %v2483
      %v2562 = vunpack.c.l.b16 %v2484
      %v2563 = vunpack.c.l.b16 %v2485
      %v2564 = vunpack.c.h.b16 %v2485
      %v2565 = vunpack.c.l.b16 %v2486
      %v2566 = vunpack.c.l.b16 %v2487
      %v2567 = vunpack.c.h.b16 %v2487
      %v2568 = vunpack.c.l.b16 %v2488
      %v2569 = vpack.c.b16 %v2524, %v2521
      %v2570 = vpack.c.b16 %v2525, %v2522
      %v2571 = vpack.c.b16 %v2526, %v2523
      %v2572 = vpack.c.b16 %v2530, %v2527
      %v2573 = vpack.c.b16 %v2531, %v2528
      %v2574 = vpack.c.b16 %v2532, %v2529
      %v2575 = vpack.c.b16 %v2536, %v2533
      %v2576 = vpack.c.b16 %v2537, %v2534
      %v2577 = vpack.c.b16 %v2538, %v2535
      %v2578 = vpack.c.b16 %v2542, %v2539
      %v2579 = vpack.c.b16 %v2543, %v2540
      %v2580 = vpack.c.b16 %v2544, %v2541
      %v2581 = vpack.c.b16 %v2548, %v2545
      %v2582 = vpack.c.b16 %v2549, %v2546
      %v2583 = vpack.c.b16 %v2550, %v2547
      %v2584 = vpack.c.b16 %v2554, %v2551
      %v2585 = vpack.c.b16 %v2555, %v2552
      %v2586 = vpack.c.b16 %v2556, %v2553
      %v2587 = vpack.c.b16 %v2560, %v2557
      %v2588 = vpack.c.b16 %v2561, %v2558
      %v2589 = vpack.c.b16 %v2562, %v2559
      %v2590 = vpack.c.b16 %v2566, %v2563
      %v2591 = vpack.c.b16 %v2567, %v2564
      %v2592 = vpack.c.b16 %v2568, %v2565
      %2617 = vmatpush.bf16.msra.mxu0 %v2590
      %2618 = vmatpush.bf16.msra.mxu0 %v2587
      %2619 = vmatpush.bf16.msra.mxu0 %v2584
      %2620 = vmatpush.bf16.msra.mxu0 %v2581
      %2621 = vmatpush.bf16.msra.mxu0 %v2578
      %2622 = vmatpush.bf16.msra.mxu0 %v2575
      %2623 = vmatpush.bf16.msra.mxu0 %v2572
      %2624 = vmatpush.bf16.msra.mxu0 %v2569
      %2625 = vmatmul.bf16.gmra.mxu0 %v2449
      %v2626 = vpop.f32.mrf.mxu0
      %v2627 = vadd.f32 0.0, %v2626
      %v2628 = vpop.f32.mrf.mxu0
      %v2629 = vadd.f32 0.0, %v2628
      %2630 = vmatmul.bf16.gmra.mxu0 %v2450
      %v2631 = vpop.f32.mrf.mxu0
      %v2632 = vadd.f32 0.0, %v2631
      %v2633 = vpop.f32.mrf.mxu0
      %v2634 = vadd.f32 0.0, %v2633
      %2635 = vmatmul.bf16.gmra.mxu0 %v2451
      %v2636 = vpop.f32.mrf.mxu0
      %v2637 = vadd.f32 0.0, %v2636
      %v2638 = vpop.f32.mrf.mxu0
      %v2639 = vadd.f32 0.0, %v2638
      %2640 = vmatmul.bf16.gmra.mxu0 %v2452
      %v2641 = vpop.f32.mrf.mxu0
      %v2642 = vadd.f32 0.0, %v2641
      %v2643 = vpop.f32.mrf.mxu0
      %v2644 = vadd.f32 0.0, %v2643
      %2645 = vmatmul.bf16.gmra.mxu0 %v2453
      %v2646 = vpop.f32.mrf.mxu0
      %v2647 = vadd.f32 0.0, %v2646
      %v2648 = vpop.f32.mrf.mxu0
      %v2649 = vadd.f32 0.0, %v2648
      %2650 = vmatmul.bf16.gmra.mxu0 %v2454
      %v2651 = vpop.f32.mrf.mxu0
      %v2652 = vadd.f32 0.0, %v2651
      %v2653 = vpop.f32.mrf.mxu0
      %v2654 = vadd.f32 0.0, %v2653
      %2655 = vmatmul.bf16.gmra.mxu0 %v2455
      %v2656 = vpop.f32.mrf.mxu0
      %v2657 = vadd.f32 0.0, %v2656
      %v2658 = vpop.f32.mrf.mxu0
      %v2659 = vadd.f32 0.0, %v2658
      %2660 = vmatmul.bf16.gmra.mxu0 %v2456
      %v2661 = vpop.f32.mrf.mxu0
      %v2662 = vadd.f32 0.0, %v2661
      %v2663 = vpop.f32.mrf.mxu0
      %v2664 = vadd.f32 0.0, %v2663
      %2665 = vdwg.mxu0
      %2666 = vmatpush.bf16.msra.mxu0 %v2591
      %2667 = vmatpush.bf16.msra.mxu0 %v2588
      %2668 = vmatpush.bf16.msra.mxu0 %v2585
      %2669 = vmatpush.bf16.msra.mxu0 %v2582
      %2670 = vmatpush.bf16.msra.mxu0 %v2579
      %2671 = vmatpush.bf16.msra.mxu0 %v2576
      %2672 = vmatpush.bf16.msra.mxu0 %v2573
      %2673 = vmatpush.bf16.msra.mxu0 %v2570
      %2674 = vmatmul.bf16.gmra.mxu0 %v2449
      %v2675 = vpop.f32.mrf.mxu0
      %v2676 = vadd.f32 0.0, %v2675
      %v2677 = vpop.f32.mrf.mxu0
      %v2678 = vadd.f32 0.0, %v2677
      %2679 = vmatmul.bf16.gmra.mxu0 %v2450
      %v2680 = vpop.f32.mrf.mxu0
      %v2681 = vadd.f32 0.0, %v2680
      %v2682 = vpop.f32.mrf.mxu0
      %v2683 = vadd.f32 0.0, %v2682
      %2684 = vmatmul.bf16.gmra.mxu0 %v2451
      %v2685 = vpop.f32.mrf.mxu0
      %v2686 = vadd.f32 0.0, %v2685
      %v2687 = vpop.f32.mrf.mxu0
      %v2688 = vadd.f32 0.0, %v2687
      %2689 = vmatmul.bf16.gmra.mxu0 %v2452
      %v2690 = vpop.f32.mrf.mxu0
      %v2691 = vadd.f32 0.0, %v2690
      %v2692 = vpop.f32.mrf.mxu0
      %v2693 = vadd.f32 0.0, %v2692
      %2694 = vmatmul.bf16.gmra.mxu0 %v2453
      %v2695 = vpop.f32.mrf.mxu0
      %v2696 = vadd.f32 0.0, %v2695
      %v2697 = vpop.f32.mrf.mxu0
      %v2698 = vadd.f32 0.0, %v2697
      %2699 = vmatmul.bf16.gmra.mxu0 %v2454
      %v2700 = vpop.f32.mrf.mxu0
      %v2701 = vadd.f32 0.0, %v2700
      %v2702 = vpop.f32.mrf.mxu0
      %v2703 = vadd.f32 0.0, %v2702
      %2704 = vmatmul.bf16.gmra.mxu0 %v2455
      %v2705 = vpop.f32.mrf.mxu0
      %v2706 = vadd.f32 0.0, %v2705
      %v2707 = vpop.f32.mrf.mxu0
      %v2708 = vadd.f32 0.0, %v2707
      %2709 = vmatmul.bf16.gmra.mxu0 %v2456
      %v2710 = vpop.f32.mrf.mxu0
      %v2711 = vadd.f32 0.0, %v2710
      %v2712 = vpop.f32.mrf.mxu0
      %v2713 = vadd.f32 0.0, %v2712
      %2714 = vdwg.mxu0
      %2715 = vmatpush.bf16.msra.mxu0 %v2592
      %2716 = vmatpush.bf16.msra.mxu0 %v2589
      %2717 = vmatpush.bf16.msra.mxu0 %v2586
      %2718 = vmatpush.bf16.msra.mxu0 %v2583
      %2719 = vmatpush.bf16.msra.mxu0 %v2580
      %2720 = vmatpush.bf16.msra.mxu0 %v2577
      %2721 = vmatpush.bf16.msra.mxu0 %v2574
      %2722 = vmatpush.bf16.msra.mxu0 %v2571
      %2723 = vmatmul.bf16.gmra.mxu0 %v2449
      %v2724 = vpop.f32.mrf.mxu0
      %v2725 = vadd.f32 0.0, %v2724
      %v2726 = vpop.f32.mrf.mxu0
      %v2727 = vadd.f32 0.0, %v2726
      %2728 = vmatmul.bf16.gmra.mxu0 %v2450
      %v2729 = vpop.f32.mrf.mxu0
      %v2730 = vadd.f32 0.0, %v2729
      %v2731 = vpop.f32.mrf.mxu0
      %v2732 = vadd.f32 0.0, %v2731
      %2733 = vmatmul.bf16.gmra.mxu0 %v2451
      %v2734 = vpop.f32.mrf.mxu0
      %v2735 = vadd.f32 0.0, %v2734
      %v2736 = vpop.f32.mrf.mxu0
      %v2737 = vadd.f32 0.0, %v2736
      %2738 = vmatmul.bf16.gmra.mxu0 %v2452
      %v2739 = vpop.f32.mrf.mxu0
      %v2740 = vadd.f32 0.0, %v2739
      %v2741 = vpop.f32.mrf.mxu0
      %v2742 = vadd.f32 0.0, %v2741
      %2743 = vmatmul.bf16.gmra.mxu0 %v2453
      %v2744 = vpop.f32.mrf.mxu0
      %v2745 = vadd.f32 0.0, %v2744
      %v2746 = vpop.f32.mrf.mxu0
      %v2747 = vadd.f32 0.0, %v2746
      %2748 = vmatmul.bf16.gmra.mxu0 %v2454
      %v2749 = vpop.f32.mrf.mxu0
      %v2750 = vadd.f32 0.0, %v2749
      %v2751 = vpop.f32.mrf.mxu0
      %v2752 = vadd.f32 0.0, %v2751
      %2753 = vmatmul.bf16.gmra.mxu0 %v2455
      %v2754 = vpop.f32.mrf.mxu0
      %v2755 = vadd.f32 0.0, %v2754
      %v2756 = vpop.f32.mrf.mxu0
      %v2757 = vadd.f32 0.0, %v2756
      %2758 = vmatmul.bf16.gmra.mxu0 %v2456
      %v2759 = vpop.f32.mrf.mxu0
      %v2760 = vadd.f32 0.0, %v2759
      %v2761 = vpop.f32.mrf.mxu0
      %v2762 = vadd.f32 0.0, %v2761
      %2763 = vdwg.mxu0
      %v2764 = vrot.slane %v2627, 7
      %v2765 = vrot.slane %v2629, 7
      %v2766 = vrot.slane %v2632, 7
      %v2767 = vrot.slane %v2634, 7
      %v2768 = vrot.slane %v2637, 7
      %v2769 = vrot.slane %v2639, 7
      %v2770 = vrot.slane %v2642, 7
      %v2771 = vrot.slane %v2644, 7
      %v2772 = vrot.slane %v2647, 7
      %v2773 = vrot.slane %v2649, 7
      %v2774 = vrot.slane %v2652, 7
      %v2775 = vrot.slane %v2654, 7
      %v2776 = vrot.slane %v2657, 7
      %v2777 = vrot.slane %v2659, 7
      %v2778 = vrot.slane %v2662, 7
      %v2779 = vrot.slane %v2664, 7
      %v2780 = vsel %vm704, %v2778, %v2779
      %v2781 = vsel %vm704, %v2777, %v2778
      %v2782 = vsel %vm704, %v2776, %v2777
      %v2783 = vsel %vm704, %v2775, %v2776
      %v2784 = vsel %vm704, %v2774, %v2775
      %v2785 = vsel %vm704, %v2773, %v2774
      %v2786 = vsel %vm704, %v2772, %v2773
      %v2787 = vsel %vm704, %v2771, %v2772
      %v2788 = vsel %vm704, %v2770, %v2771
      %v2789 = vsel %vm704, %v2769, %v2770
      %v2790 = vsel %vm704, %v2768, %v2769
      %v2791 = vsel %vm704, %v2767, %v2768
      %v2792 = vsel %vm704, %v2766, %v2767
      %v2793 = vsel %vm704, %v2765, %v2766
      %v2794 = vsel %vm704, %v2764, %v2765
      %v2795 = vsel %vm704, %v2779, %v2764
      %v2796 = vmul.f32 %v2795, %v724
      %v2797 = vmul.f32 %v2794, %v729
      %v2798 = vmul.f32 %v2793, %v734
      %v2799 = vmul.f32 %v2792, %v739
      %v2800 = vmul.f32 %v2791, %v744
      %v2801 = vmul.f32 %v2790, %v749
      %v2802 = vmul.f32 %v2789, %v754
      %v2803 = vmul.f32 %v2788, %v759
      %v2804 = vmul.f32 %v2787, %v764
      %v2805 = vmul.f32 %v2786, %v769
      %v2806 = vmul.f32 %v2785, %v774
      %v2807 = vmul.f32 %v2784, %v779
      %v2808 = vmul.f32 %v2783, %v784
      %v2809 = vmul.f32 %v2782, %v789
      %v2810 = vmul.f32 %v2781, %v794
      %v2811 = vmul.f32 %v2780, %v799
      %v2812 = vrot.slane %v2725, 1
      %v2813 = vrot.slane %v2727, 1
      %v2814 = vrot.slane %v2730, 1
      %v2815 = vrot.slane %v2732, 1
      %v2816 = vrot.slane %v2735, 1
      %v2817 = vrot.slane %v2737, 1
      %v2818 = vrot.slane %v2740, 1
      %v2819 = vrot.slane %v2742, 1
      %v2820 = vrot.slane %v2745, 1
      %v2821 = vrot.slane %v2747, 1
      %v2822 = vrot.slane %v2750, 1
      %v2823 = vrot.slane %v2752, 1
      %v2824 = vrot.slane %v2755, 1
      %v2825 = vrot.slane %v2757, 1
      %v2826 = vrot.slane %v2760, 1
      %v2827 = vrot.slane %v2762, 1
      %v2828 = vsel %vm833, %v2826, %v2827
      %v2829 = vsel %vm833, %v2825, %v2826
      %v2830 = vsel %vm833, %v2824, %v2825
      %v2831 = vsel %vm833, %v2823, %v2824
      %v2832 = vsel %vm833, %v2822, %v2823
      %v2833 = vsel %vm833, %v2821, %v2822
      %v2834 = vsel %vm833, %v2820, %v2821
      %v2835 = vsel %vm833, %v2819, %v2820
      %v2836 = vsel %vm833, %v2818, %v2819
      %v2837 = vsel %vm833, %v2817, %v2818
      %v2838 = vsel %vm833, %v2816, %v2817
      %v2839 = vsel %vm833, %v2815, %v2816
      %v2840 = vsel %vm833, %v2814, %v2815
      %v2841 = vsel %vm833, %v2813, %v2814
      %v2842 = vsel %vm833, %v2812, %v2813
      %v2843 = vsel %vm833, %v2827, %v2812
      %v2844 = vmul.f32 %v2842, %v852
      %v2845 = vmul.f32 %v2841, %v856
      %v2846 = vmul.f32 %v2840, %v860
      %v2847 = vmul.f32 %v2839, %v864
      %v2848 = vmul.f32 %v2838, %v868
      %v2849 = vmul.f32 %v2837, %v872
      %v2850 = vmul.f32 %v2836, %v876
      %v2851 = vmul.f32 %v2835, %v880
      %v2852 = vmul.f32 %v2834, %v884
      %v2853 = vmul.f32 %v2833, %v888
      %v2854 = vmul.f32 %v2832, %v892
      %v2855 = vmul.f32 %v2831, %v896
      %v2856 = vmul.f32 %v2830, %v900
      %v2857 = vmul.f32 %v2829, %v904
      %v2858 = vmul.f32 %v2828, %v908
      %v2859 = vmul.f32 %v2843, %v912
      %v2860 = vadd.f32 %v2676, %v2796
      %v2861 = vadd.f32 %v2678, %v2797
      %v2862 = vadd.f32 %v2681, %v2798
      %v2863 = vadd.f32 %v2683, %v2799
      %v2864 = vadd.f32 %v2686, %v2800
      %v2865 = vadd.f32 %v2688, %v2801
      %v2866 = vadd.f32 %v2691, %v2802
      %v2867 = vadd.f32 %v2693, %v2803
      %v2868 = vadd.f32 %v2696, %v2804
      %v2869 = vadd.f32 %v2698, %v2805
      %v2870 = vadd.f32 %v2701, %v2806
      %v2871 = vadd.f32 %v2703, %v2807
      %v2872 = vadd.f32 %v2706, %v2808
      %v2873 = vadd.f32 %v2708, %v2809
      %v2874 = vadd.f32 %v2711, %v2810
      %v2875 = vadd.f32 %v2713, %v2811
      %v2876 = vadd.f32 %v2860, %v2844
      %v2877 = vadd.f32 %v2861, %v2845
      %v2878 = vadd.f32 %v2862, %v2846
      %v2879 = vadd.f32 %v2863, %v2847
      %v2880 = vadd.f32 %v2864, %v2848
      %v2881 = vadd.f32 %v2865, %v2849
      %v2882 = vadd.f32 %v2866, %v2850
      %v2883 = vadd.f32 %v2867, %v2851
      %v2884 = vadd.f32 %v2868, %v2852
      %v2885 = vadd.f32 %v2869, %v2853
      %v2886 = vadd.f32 %v2870, %v2854
      %v2887 = vadd.f32 %v2871, %v2855
      %v2888 = vadd.f32 %v2872, %v2856
      %v2889 = vadd.f32 %v2873, %v2857
      %v2890 = vadd.f32 %v2874, %v2858
      %v2891 = vadd.f32 %v2875, %v2859
      %v2892 = vld [vmem:[%s10] sm:$0x1]
      %v2893 = vperm.slane %v2892, 0
      %v2894 = vadd.f32 %v2876, %v2893
      %v2895 = vadd.f32 %v2877, %v2893
      %v2896 = vadd.f32 %v2878, %v2893
      %v2897 = vadd.f32 %v2879, %v2893
      %v2898 = vadd.f32 %v2880, %v2893
      %v2899 = vadd.f32 %v2881, %v2893
      %v2900 = vadd.f32 %v2882, %v2893
      %v2901 = vadd.f32 %v2883, %v2893
      %v2902 = vadd.f32 %v2884, %v2893
      %v2903 = vadd.f32 %v2885, %v2893
      %v2904 = vadd.f32 %v2886, %v2893
      %v2905 = vadd.f32 %v2887, %v2893
      %v2906 = vadd.f32 %v2888, %v2893
      %v2907 = vadd.f32 %v2889, %v2893
      %v2908 = vadd.f32 %v2890, %v2893
      %v2909 = vadd.f32 %v2891, %v2893
      %vm2910 = vcmp.gt.f32.partialorder %v2894, 0.0
      %vm2911 = vcmp.gt.f32.partialorder %v2895, 0.0
      %vm2912 = vcmp.gt.f32.partialorder %v2896, 0.0
      %vm2913 = vcmp.gt.f32.partialorder %v2897, 0.0
      %vm2914 = vcmp.gt.f32.partialorder %v2898, 0.0
      %vm2915 = vcmp.gt.f32.partialorder %v2899, 0.0
      %vm2916 = vcmp.gt.f32.partialorder %v2900, 0.0
      %vm2917 = vcmp.gt.f32.partialorder %v2901, 0.0
      %vm2918 = vcmp.gt.f32.partialorder %v2902, 0.0
      %vm2919 = vcmp.gt.f32.partialorder %v2903, 0.0
      %vm2920 = vcmp.gt.f32.partialorder %v2904, 0.0
      %vm2921 = vcmp.gt.f32.partialorder %v2905, 0.0
      %vm2922 = vcmp.gt.f32.partialorder %v2906, 0.0
      %vm2923 = vcmp.gt.f32.partialorder %v2907, 0.0
      %vm2924 = vcmp.gt.f32.partialorder %v2908, 0.0
      %vm2925 = vcmp.gt.f32.partialorder %v2909, 0.0
      %v2926 = vld [vmem:[%s10 + $0x1] sm:$0x1]
      %v2927 = vperm.slane %v2926, 0
      %v2928 = vmul.f32 %v2927, %v2894
      %v2929 = vmul.f32 %v2927, %v2895
      %v2930 = vmul.f32 %v2927, %v2896
      %v2931 = vmul.f32 %v2927, %v2897
      %v2932 = vmul.f32 %v2927, %v2898
      %v2933 = vmul.f32 %v2927, %v2899
      %v2934 = vmul.f32 %v2927, %v2900
      %v2935 = vmul.f32 %v2927, %v2901
      %v2936 = vmul.f32 %v2927, %v2902
      %v2937 = vmul.f32 %v2927, %v2903
      %v2938 = vmul.f32 %v2927, %v2904
      %v2939 = vmul.f32 %v2927, %v2905
      %v2940 = vmul.f32 %v2927, %v2906
      %v2941 = vmul.f32 %v2927, %v2907
      %v2942 = vmul.f32 %v2927, %v2908
      %v2943 = vmul.f32 %v2927, %v2909
      %v2944 = vsel %vm2910, %v2894, %v2928
      %v2945 = vsel %vm2911, %v2895, %v2929
      %v2946 = vsel %vm2912, %v2896, %v2930
      %v2947 = vsel %vm2913, %v2897, %v2931
      %v2948 = vsel %vm2914, %v2898, %v2932
      %v2949 = vsel %vm2915, %v2899, %v2933
      %v2950 = vsel %vm2916, %v2900, %v2934
      %v2951 = vsel %vm2917, %v2901, %v2935
      %v2952 = vsel %vm2918, %v2902, %v2936
      %v2953 = vsel %vm2919, %v2903, %v2937
      %v2954 = vsel %vm2920, %v2904, %v2938
      %v2955 = vsel %vm2921, %v2905, %v2939
      %v2956 = vsel %vm2922, %v2906, %v2940
      %v2957 = vsel %vm2923, %v2907, %v2941
      %v2958 = vsel %vm2924, %v2908, %v2942
      %v2959 = vsel %vm2925, %v2909, %v2943
      %v2960 = vld [vmem:[%s11] sm:$0xf]
      %v2961 = vld [vmem:[%s11 + $0x4] sm:$0xf]
      %v2962 = vld [vmem:[%s11 + $0x8] sm:$0xf]
      %v2963 = vld [vmem:[%s11 + $0xc] sm:$0xf]
      %v2964 = vld [vmem:[%s11 + $0x10] sm:$0xf]
      %v2965 = vld [vmem:[%s11 + $0x14] sm:$0xf]
      %v2966 = vld [vmem:[%s11 + $0x18] sm:$0xf]
      %v2967 = vld [vmem:[%s11 + $0x1c] sm:$0xf]
      %v2968 = vld [vmem:[%s11 + $0x20] sm:$0xf]
      %v2969 = vld [vmem:[%s11 + $0x24] sm:$0xf]
      %v2970 = vld [vmem:[%s11 + $0x28] sm:$0xf]
      %v2971 = vld [vmem:[%s11 + $0x2c] sm:$0xf]
      %v2972 = vld [vmem:[%s11 + $0x30] sm:$0xf]
      %v2973 = vld [vmem:[%s11 + $0x34] sm:$0xf]
      %v2974 = vld [vmem:[%s11 + $0x38] sm:$0xf]
      %v2975 = vld [vmem:[%s11 + $0x3c] sm:$0xf]
      %v2976 = vld [vmem:[%s12] sm:$0x1]
      %v2978 = vperm.slane %v2976, 0
      %v2996 = vunpack.c.l.b16 %v2960
      %v2997 = vunpack.c.l.b16 %v2961
      %v2998 = vunpack.c.l.b16 %v2962
      %v2999 = vunpack.c.l.b16 %v2963
      %v3000 = vunpack.c.l.b16 %v2964
      %v3001 = vunpack.c.l.b16 %v2965
      %v3002 = vunpack.c.l.b16 %v2966
      %v3003 = vunpack.c.l.b16 %v2967
      %v3004 = vunpack.c.l.b16 %v2968
      %v3005 = vunpack.c.l.b16 %v2969
      %v3006 = vunpack.c.l.b16 %v2970
      %v3007 = vunpack.c.l.b16 %v2971
      %v3008 = vunpack.c.l.b16 %v2972
      %v3009 = vunpack.c.l.b16 %v2973
      %v3010 = vunpack.c.l.b16 %v2974
      %v3011 = vunpack.c.l.b16 %v2975
      %v3012 = vpack.c.b16 %v2997, %v2996
      %v3013 = vpack.c.b16 %v2999, %v2998
      %v3014 = vpack.c.b16 %v3001, %v3000
      %v3015 = vpack.c.b16 %v3003, %v3002
      %v3016 = vpack.c.b16 %v3005, %v3004
      %v3017 = vpack.c.b16 %v3007, %v3006
      %v3018 = vpack.c.b16 %v3009, %v3008
      %v3019 = vpack.c.b16 %v3011, %v3010
      %3028 = vmatpush.bf16.msra.mxu0 %v3019
      %3029 = vmatpush.bf16.msra.mxu0 %v3018
      %3030 = vmatpush.bf16.msra.mxu0 %v3017
      %3031 = vmatpush.bf16.msra.mxu0 %v3016
      %3032 = vmatpush.bf16.msra.mxu0 %v3015
      %3033 = vmatpush.bf16.msra.mxu0 %v3014
      %3034 = vmatpush.bf16.msra.mxu0 %v3013
      %3035 = vmatpush.bf16.msra.mxu0 %v3012
      %3036 = vmatmul.bf16.gmra.mxu0 %v1938
      %v3037 = vpop.f32.mrf.mxu0
      %v3038 = vadd.f32 %v2978, %v3037
      %v3039 = vpop.f32.mrf.mxu0
      %v3040 = vadd.f32 %v2978, %v3039
      %3041 = vmatmul.bf16.gmra.mxu0 %v1939
      %v3042 = vpop.f32.mrf.mxu0
      %v3043 = vadd.f32 %v2978, %v3042
      %v3044 = vpop.f32.mrf.mxu0
      %v3045 = vadd.f32 %v2978, %v3044
      %3046 = vmatmul.bf16.gmra.mxu0 %v1940
      %v3047 = vpop.f32.mrf.mxu0
      %v3048 = vadd.f32 %v2978, %v3047
      %v3049 = vpop.f32.mrf.mxu0
      %v3050 = vadd.f32 %v2978, %v3049
      %3051 = vmatmul.bf16.gmra.mxu0 %v1941
      %v3052 = vpop.f32.mrf.mxu0
      %v3053 = vadd.f32 %v2978, %v3052
      %v3054 = vpop.f32.mrf.mxu0
      %v3055 = vadd.f32 %v2978, %v3054
      %3056 = vmatmul.bf16.gmra.mxu0 %v1942
      %v3057 = vpop.f32.mrf.mxu0
      %v3058 = vadd.f32 %v2978, %v3057
      %v3059 = vpop.f32.mrf.mxu0
      %v3060 = vadd.f32 %v2978, %v3059
      %3061 = vmatmul.bf16.gmra.mxu0 %v1943
      %v3062 = vpop.f32.mrf.mxu0
      %v3063 = vadd.f32 %v2978, %v3062
      %v3064 = vpop.f32.mrf.mxu0
      %v3065 = vadd.f32 %v2978, %v3064
      %3066 = vmatmul.bf16.gmra.mxu0 %v1944
      %v3067 = vpop.f32.mrf.mxu0
      %v3068 = vadd.f32 %v2978, %v3067
      %v3069 = vpop.f32.mrf.mxu0
      %v3070 = vadd.f32 %v2978, %v3069
      %3071 = vmatmul.bf16.gmra.mxu0 %v1945
      %v3072 = vpop.f32.mrf.mxu0
      %v3073 = vadd.f32 %v2978, %v3072
      %v3074 = vpop.f32.mrf.mxu0
      %v3075 = vadd.f32 %v2978, %v3074
      %3076 = vdwg.mxu0
      %v3077 = vadd.f32 %v3038, %v2944
      %v3078 = vadd.f32 %v3040, %v2945
      %v3079 = vadd.f32 %v3043, %v2946
      %v3080 = vadd.f32 %v3045, %v2947
      %v3081 = vadd.f32 %v3048, %v2948
      %v3082 = vadd.f32 %v3050, %v2949
      %v3083 = vadd.f32 %v3053, %v2950
      %v3084 = vadd.f32 %v3055, %v2951
      %v3085 = vadd.f32 %v3058, %v2952
      %v3086 = vadd.f32 %v3060, %v2953
      %v3087 = vadd.f32 %v3063, %v2954
      %v3088 = vadd.f32 %v3065, %v2955
      %v3089 = vadd.f32 %v3068, %v2956
      %v3090 = vadd.f32 %v3070, %v2957
      %v3091 = vadd.f32 %v3073, %v2958
      %v3092 = vadd.f32 %v3075, %v2959
      %3093 = vst [vmem:[%s464] sm:$0xff] %v3077
      %3094 = vst [vmem:[%s464 + $0x8] sm:$0xff] %v3078
      %3095 = vst [vmem:[%s464 + $0x10] sm:$0xff] %v3079
      %3096 = vst [vmem:[%s464 + $0x18] sm:$0xff] %v3080
      %3097 = vst [vmem:[%s464 + $0x20] sm:$0xff] %v3081
      %3098 = vst [vmem:[%s464 + $0x28] sm:$0xff] %v3082
      %3099 = vst [vmem:[%s464 + $0x30] sm:$0xff] %v3083
      %3100 = vst [vmem:[%s464 + $0x38] sm:$0xff] %v3084
      %3101 = vst [vmem:[%s464 + $0x40] sm:$0xff] %v3085
      %3102 = vst [vmem:[%s464 + $0x48] sm:$0xff] %v3086
      %3103 = vst [vmem:[%s464 + $0x50] sm:$0xff] %v3087
      %3104 = vst [vmem:[%s464 + $0x58] sm:$0xff] %v3088
      %3105 = vst [vmem:[%s464 + $0x60] sm:$0xff] %v3089
      %3106 = vst [vmem:[%s464 + $0x68] sm:$0xff] %v3090
      %3107 = vst [vmem:[%s464 + $0x70] sm:$0xff] %v3091
      %3108 = vst [vmem:[%s464 + $0x78] sm:$0xff] %v3092
      %s3109 = smul.u32 16, %s24
      %p3110 = scmp.lt.s32.totalorder %s3109, 31
      %s3111 = scalar_select %p3110, %s3109, 31
      %s3112 = smul.addr %s3111, 8
      %s3113 = scalar_lea.vmem %s13, %s3112
      // Predicated region
      $region73: #{conv_up_block_forward.1} parent=71 // pred_check
        %p3114 = pneg %p325
      $region74: #{conv_up_block_forward.1} parent=71 // pred_check_branch
        %3116 = sbr.rel (%p3114) target = $region76
      $region75: #{conv_up_block_forward.1} parent=71 // pred_region
        %s3117 = smul.u32 16, %s24
      $region76: #{conv_up_block_forward.1} parent=71 // pred_fallthru
        _
    $region72: #{conv_up_block_forward.1} parent=5 // pred_fallthru
      _
    %p3118 = scmp.le.s32.totalorder 2, %s19
    // Predicated region
    $region77: #{conv_up_block_forward.1} parent=5 // pred_check
      %p3119 = pneg %p3118
    $region78: #{conv_up_block_forward.1} parent=5 // pred_check_branch
      %3121 = sbr.rel (%p3119) target = $region80
    $region79: #{conv_up_block_forward.1} parent=5 // pred_region
      %s3122 = ssub.s32 %s19, 2
      // Predicated region
      $region81: #{conv_up_block_forward.1} parent=79 // pred_check
        %p3123 = pneg %p331
      $region82: #{conv_up_block_forward.1} parent=79 // pred_check_branch
        %3125 = sbr.rel (%p3123) target = $region84
      $region83: #{conv_up_block_forward.1} parent=79 // pred_region
        %s3126 = smul.u32 16, %s25
        %p3127 = scmp.lt.s32.totalorder %s3126, 31
        %s3128 = scalar_select %p3127, %s3126, 31
        %s3129 = smul.addr %s3128, 8
        %s3130 = scalar_lea.vmem %s13, %s3129
      $region84: #{conv_up_block_forward.1} parent=79 // pred_fallthru
        _
    $region80: #{conv_up_block_forward.1} parent=5 // pred_fallthru
      _
  $region6: #{conv_up_block_forward.1} parent=0 // loop_footer
    %s23 = sadd.s32 1, %s19
  $region7: #{conv_up_block_forward.1} parent=0 // loop_footer_branch
    %18 = sbr.rel target = $region3
  $region8: #{conv_up_block_forward.1} parent=0 // loop_exit
    _

</llo_original>
